<compile_context>
chip_gen: v7x
topology: tpu7x:2x2x1
jax: 0.10.0
libtpu: 0.0.40
codegen_flags: <defaults>
</compile_context>

<pallas_src>
import math

import jax
import jax.numpy as jnp
from jax.experimental import pallas as pl
from jax.experimental.pallas import tpu as pltpu

# ---------------- tiny synthetic BERT config ----------------
VOCAB = 64
TYPE_VOCAB = 2
MAX_POS = 32
HIDDEN = 32            # covid-twitter-bert uses 1024; scaled down for the demo
NUM_HEADS = 2
HEAD_DIM = HIDDEN // NUM_HEADS
INTERMEDIATE = 64
NUM_LAYERS = 2
LN_EPS = 1e-12


def _layer_norm(x, g, b):
    # single-pass variance: E[x^2] - mu^2 (clamped for numerical safety)
    mu = jnp.mean(x, axis=-1, keepdims=True)
    ex2 = jnp.mean(x * x, axis=-1, keepdims=True)
    var = jnp.maximum(ex2 - mu * mu, 0.0)
    return (x - mu) * jax.lax.rsqrt(var + LN_EPS) * g + b


# ---------------- Pallas kernel: one (batch block, layer) grid step ----------------
def bert_encoder_kernel(x_ref, mask_ref,
                        emb_g_ref, emb_b_ref,
                        wqkv_ref, bqkv_ref,
                        wo_ref, bo_ref, ln1g_ref, ln1b_ref,
                        wf1_ref, bf1_ref, wf2_ref, bf2_ref,
                        ln2g_ref, ln2b_ref,
                        out_ref, act_ref):
    # x_ref:    (1, BT, S, H) embedded tokens for this batch block (read at layer 0)
    # mask_ref: (1, BT, S)    key-keep vector (1.0 = keep, 0.0 = pad)
    # wqkv:     (1, H, 3H) bf16   fused Q|K|V projection for this layer
    # wo/wf1/wf2: (1, H, H)/(1, H, I)/(1, I, H) bf16
    # act_ref:  (BT*S, H) f32 VMEM scratch carrying activations across the layer axis
    _, BT, S, H = x_ref.shape
    M = BT * S
    NH, HD = NUM_HEADS, HEAD_DIM
    G = BT * NH
    l = pl.program_id(1)
    bf = jnp.bfloat16

    # ---- layer 0: embedding LayerNorm into the activation scratch ----
    @pl.when(l == 0)
    def _():
        x0 = x_ref[0].reshape(M, H)
        act_ref[...] = _layer_norm(x0, emb_g_ref[...], emb_b_ref[...])

    x = act_ref[...]                                              # (M, H) f32

    # ---- fused QKV projection: one lane-dense (M,H)@(H,3H) MXU pass ----
    qkv = jnp.dot(x.astype(bf), wqkv_ref[0],
                  preferred_element_type=jnp.float32) + bqkv_ref[0]   # (M, 3H) f32
    q = qkv[:, :H] * (1.0 / math.sqrt(HD))
    k = qkv[:, H:2 * H]
    v = qkv[:, 2 * H:]

    def to_heads(t):      # (M, H) -> (BT*NH, S, HD), bf16 operands for the MXU
        t = t.reshape(BT, S, NH, HD)
        t = jnp.transpose(t, (0, 2, 1, 3))
        return t.reshape(G, S, HD).astype(bf)

    qh, kh, vh = to_heads(q), to_heads(k), to_heads(v)

    # ---- attention with a real batch dim (no cross-batch-element FLOPs) ----
    sc = jnp.einsum("gqd,gkd->gqk", qh, kh,
                    preferred_element_type=jnp.float32)           # (G, S, S)
    keep = mask_ref[0] > 0.5                                      # (BT, S)
    neg = jnp.where(keep, 0.0, -1e9).astype(jnp.float32)          # (BT, S)
    neg = jnp.broadcast_to(neg[:, None, None, :], (BT, NH, 1, S)).reshape(G, 1, S)
    sc = sc + neg

    # explicit softmax; the divide goes to the EUP via the approximate reciprocal
    sc_max = jnp.max(sc, axis=-1, keepdims=True)
    p = jnp.exp(sc - sc_max)
    denom = jnp.sum(p, axis=-1, keepdims=True)
    p = p * pl.reciprocal(denom, approx=True)

    ctx = jnp.einsum("gqk,gkd->gqd", p.astype(bf), vh,
                     preferred_element_type=jnp.float32)          # (G, S, HD)
    ctx = jnp.transpose(ctx.reshape(BT, NH, S, HD), (0, 2, 1, 3)).reshape(M, H)

    # ---- single lane-dense output projection (no per-head passes / head-sum) ----
    attn = jnp.dot(ctx.astype(bf), wo_ref[0],
                   preferred_element_type=jnp.float32) + bo_ref[0]    # (M, H)
    x = _layer_norm(x + attn, ln1g_ref[0], ln1b_ref[0])

    # ---- feed forward: two lane-dense MXU passes on the whole slab ----
    ff = jax.nn.gelu(
        jnp.dot(x.astype(bf), wf1_ref[0],
                preferred_element_type=jnp.float32) + bf1_ref[0],
        approximate=True)
    ffo = jnp.dot(ff.astype(bf), wf2_ref[0],
                  preferred_element_type=jnp.float32) + bf2_ref[0]
    x = _layer_norm(x + ffo, ln2g_ref[0], ln2b_ref[0])

    act_ref[...] = x                                              # carry to next layer

    # ---- last layer: CLS rows via a sublane-strided slice -> lane-dense (BT, H) ----
    @pl.when(l == pl.num_programs(1) - 1)
    def _():
        out_ref[0] = act_ref[pl.ds(0, BT, stride=S), :]


def sentiment_classifier_forward(params, seq, attn_masks, segments_ids,
                                 batch_block=None):
    """Equivalent of SentimentClassifier.forward -> logits of shape (B, 1)."""
    B_, S_ = seq.shape
    # default batch_block = B // 2 so nb >= 2 grid steps exist (v7x: 2 TensorCores)
    BT = max(1, B_ // 2) if batch_block is None else batch_block
    assert B_ % BT == 0, "batch must divide into batch blocks"
    nb = B_ // BT
    L, H, I = NUM_LAYERS, HIDDEN, INTERMEDIATE
    bf = jnp.bfloat16

    # embedding lookups (gather) stay in XLA; the encoder runs in Pallas
    x_emb = (params["word_emb"][seq]
             + params["pos_emb"][:S_][None, :, :]
             + params["type_emb"][segments_ids]).astype(jnp.float32)
    x_emb = x_emb.reshape(nb, BT, S_, H)
    keep = attn_masks.astype(jnp.float32).reshape(nb, BT, S_)     # O(S) mask, not O(S^2)

    # one-time layout plumbing: fuse QKV weights, cast matmul weights to bf16
    wqkv = jnp.concatenate([params["wq"], params["wk"], params["wv"]], axis=-1).astype(bf)
    bqkv = jnp.concatenate([params["bq"], params["bk"], params["bv"]], axis=-1)  # f32

    weights = [
        params["emb_g"], params["emb_b"],
        wqkv, bqkv,
        params["wo"].astype(bf), params["bo"],
        params["ln1g"], params["ln1b"],
        params["wf1"].astype(bf), params["bf1"],
        params["wf2"].astype(bf), params["bf2"],
        params["ln2g"], params["ln2b"],
    ]

    def resident(arr):                    # constant across the whole grid
        nd = arr.ndim
        return pl.BlockSpec(arr.shape, lambda b, l, _nd=nd: (0,) * _nd)

    def per_layer(arr):                   # streamed layer-by-layer along grid axis 1
        nd = arr.ndim
        return pl.BlockSpec((1,) + arr.shape[1:],
                            lambda b, l, _nd=nd: (l,) + (0,) * (_nd - 1))

    in_specs = [
        pl.BlockSpec((1, BT, S_, H), lambda b, l: (b, 0, 0, 0)),   # embedded tokens
        pl.BlockSpec((1, BT, S_), lambda b, l: (b, 0, 0)),         # key-keep vector
        resident(params["emb_g"]), resident(params["emb_b"]),
    ] + [per_layer(w) for w in weights[2:]]

    cls_slab = pl.pallas_call(
        bert_encoder_kernel,
        out_shape=jax.ShapeDtypeStruct((nb, BT, H), jnp.float32),
        grid_spec=pltpu.PrefetchScalarGridSpec(
            num_scalar_prefetch=0,
            grid=(nb, L),                                          # layers stream on axis 1
            in_specs=in_specs,
            out_specs=pl.BlockSpec((1, BT, H), lambda b, l: (b, 0, 0)),
            scratch_shapes=[pltpu.VMEM((BT * S_, H), jnp.float32)],  # activation carry
        ),
        compiler_params=pltpu.CompilerParams(
            dimension_semantics=("parallel", "arbitrary"),
            vmem_limit_bytes=32 * 1024 * 1024),
    )(x_emb, keep, *weights)

    # final H -> 1 classifier head (tiny; kernel output kept lane-dense instead)
    cls = cls_slab.reshape(B_, H)
    return cls @ params["wc"] + params["bc"]


# ---------------- pure-JAX reference (mirrors the kernel's bf16/f32 precision) ----------------
def reference_forward(params, seq, attn_masks, segments_ids):
    B_, S_ = seq.shape
    H, NH, HD = HIDDEN, NUM_HEADS, HEAD_DIM
    bf = jnp.bfloat16
    scale = 1.0 / math.sqrt(HD)

    def mm(a, b):     # bf16 operands, f32 accumulation (same as the kernel)
        return jnp.dot(a.astype(bf), b.astype(bf), preferred_element_type=jnp.float32)

    x = (params["word_emb"][seq]
         + params["pos_emb"][:S_][None]
         + params["type_emb"][segments_ids]).astype(jnp.float32).reshape(B_ * S_, H)
    x = _layer_norm(x, params["emb_g"], params["emb_b"])
    neg = jnp.where(attn_masks > 0, 0.0, -1e9).astype(jnp.float32)          # (B, S)

    for l in range(NUM_LAYERS):
        q = (mm(x, params["wq"][l]) + params["bq"][l]) * scale
        k = mm(x, params["wk"][l]) + params["bk"][l]
        v = mm(x, params["wv"][l]) + params["bv"][l]

        def heads(t):
            return jnp.transpose(t.reshape(B_, S_, NH, HD),
                                 (0, 2, 1, 3)).reshape(B_ * NH, S_, HD).astype(bf)

        qh, kh, vh = heads(q), heads(k), heads(v)
        sc = jnp.einsum("gqd,gkd->gqk", qh, kh, preferred_element_type=jnp.float32)
        sc = sc + jnp.repeat(neg, NH, axis=0)[:, None, :]
        sc = sc - jnp.max(sc, axis=-1, keepdims=True)
        p = jnp.exp(sc)
        p = p / jnp.sum(p, axis=-1, keepdims=True)
        ctx = jnp.einsum("gqk,gkd->gqd", p.astype(bf), vh,
                         preferred_element_type=jnp.float32)
        ctx = jnp.transpose(ctx.reshape(B_, NH, S_, HD),
                            (0, 2, 1, 3)).reshape(B_ * S_, H)

        attn = mm(ctx, params["wo"][l]) + params["bo"][l]
        x = _layer_norm(x + attn, params["ln1g"][l], params["ln1b"][l])
        ff = jax.nn.gelu(mm(x, params["wf1"][l]) + params["bf1"][l], approximate=True)
        x = _layer_norm(x + mm(ff, params["wf2"][l]) + params["bf2"][l],
                        params["ln2g"][l], params["ln2b"][l])

    cls = x.reshape(B_, S_, H)[:, 0]
    return cls @ params["wc"] + params["bc"]


# ---------------- deterministic parameter init ----------------
def init_params(key):
    keys = jax.random.split(key, 10)

    def nrm(k, shape):
        return (0.02 * jax.random.normal(k, shape)).astype(jnp.float32)

    L, H, I = NUM_LAYERS, HIDDEN, INTERMEDIATE
    return {
        "word_emb": nrm(keys[0], (VOCAB, H)),
        "pos_emb": nrm(keys[1], (MAX_POS, H)),
        "type_emb": nrm(keys[2], (TYPE_VOCAB, H)),
        "emb_g": jnp.ones((1, H), jnp.float32),
        "emb_b": jnp.zeros((1, H), jnp.float32),
        "wq": nrm(keys[3], (L, H, H)), "bq": jnp.zeros((L, 1, H), jnp.float32),
        "wk": nrm(keys[4], (L, H, H)), "bk": jnp.zeros((L, 1, H), jnp.float32),
        "wv": nrm(keys[5], (L, H, H)), "bv": jnp.zeros((L, 1, H), jnp.float32),
        "wo": nrm(keys[6], (L, H, H)), "bo": jnp.zeros((L, 1, H), jnp.float32),
        "ln1g": jnp.ones((L, 1, H), jnp.float32), "ln1b": jnp.zeros((L, 1, H), jnp.float32),
        "wf1": nrm(keys[7], (L, H, I)), "bf1": jnp.zeros((L, 1, I), jnp.float32),
        "wf2": nrm(keys[8], (L, I, H)), "bf2": jnp.zeros((L, 1, H), jnp.float32),
        "ln2g": jnp.ones((L, 1, H), jnp.float32), "ln2b": jnp.zeros((L, 1, H), jnp.float32),
        "wc": nrm(keys[9], (H, 1)), "bc": jnp.zeros((1, 1), jnp.float32),
    }


if __name__ == "__main__":
    key = jax.random.PRNGKey(0)
    pkey, skey = jax.random.split(key, 2)
    params = init_params(pkey)

    B_, S_ = 2, 8
    seq = jax.random.randint(skey, (B_, S_), 0, VOCAB, dtype=jnp.int32)
    attn_masks = jnp.array([[1, 1, 1, 1, 1, 1, 1, 1],
                            [1, 1, 1, 1, 1, 0, 0, 0]], dtype=jnp.int32)
    segments_ids = jnp.zeros((B_, S_), dtype=jnp.int32)

    logits = jax.block_until_ready(
        sentiment_classifier_forward(params, seq, attn_masks, segments_ids))
    assert logits.shape == (B_, 1)

    ref = reference_forward(params, seq, attn_masks, segments_ids)
    # kernel and reference share the same bf16-operand / f32-accumulate precision;
    # the only divergence is the approximate (EUP) softmax reciprocal.
    if not jnp.allclose(logits, ref, atol=2e-3, rtol=2e-3):
        raise AssertionError(f"mismatch: pallas={logits} ref={ref}")

    print("KERNEL_OK")
</pallas_src>

<mosaic_0001>
module attributes {stable_mosaic.version = 11 : i64} {
  func.func @bert_encoder_kernel(%arg0: i32, %arg1: i32, %arg2: memref<1x1x8x32xf32, #tpu.memory_space<vmem>>, %arg3: memref<1x1x8xf32, #tpu.memory_space<vmem>>, %arg4: memref<1x32xf32, #tpu.memory_space<vmem>>, %arg5: memref<1x32xf32, #tpu.memory_space<vmem>>, %arg6: memref<1x32x96xbf16, #tpu.memory_space<vmem>>, %arg7: memref<1x1x96xf32, #tpu.memory_space<vmem>>, %arg8: memref<1x32x32xbf16, #tpu.memory_space<vmem>>, %arg9: memref<1x1x32xf32, #tpu.memory_space<vmem>>, %arg10: memref<1x1x32xf32, #tpu.memory_space<vmem>>, %arg11: memref<1x1x32xf32, #tpu.memory_space<vmem>>, %arg12: memref<1x32x64xbf16, #tpu.memory_space<vmem>>, %arg13: memref<1x1x64xf32, #tpu.memory_space<vmem>>, %arg14: memref<1x64x32xbf16, #tpu.memory_space<vmem>>, %arg15: memref<1x1x32xf32, #tpu.memory_space<vmem>>, %arg16: memref<1x1x32xf32, #tpu.memory_space<vmem>>, %arg17: memref<1x1x32xf32, #tpu.memory_space<vmem>>, %arg18: memref<1x1x32xf32, #tpu.memory_space<vmem>>, %arg19: memref<8x32xf32, #tpu.memory_space<vmem>>) attributes {dimension_semantics = [#tpu.dimension_semantics<parallel>, #tpu.dimension_semantics<arbitrary>], iteration_bounds = array<i64: 2, 2>, scalar_prefetch = 0 : i64, scratch_operands = 1 : i64, tpu.core_type = #tpu.core_type<tc>, window_params = [{transform_indices = @transform_0, window_bounds = array<i64: 1, 1, 8, 32>}, {transform_indices = @transform_1, window_bounds = array<i64: 1, 1, 8>}, {pipeline_mode = #tpu.pipeline_mode<synchronous>, transform_indices = @transform_2, window_bounds = array<i64: 1, 32>}, {pipeline_mode = #tpu.pipeline_mode<synchronous>, transform_indices = @transform_3, window_bounds = array<i64: 1, 32>}, {transform_indices = @transform_4, window_bounds = array<i64: 1, 32, 96>}, {transform_indices = @transform_5, window_bounds = array<i64: 1, 1, 96>}, {transform_indices = @transform_6, window_bounds = array<i64: 1, 32, 32>}, {transform_indices = @transform_7, window_bounds = array<i64: 1, 1, 32>}, {transform_indices = @transform_8, window_bounds = array<i64: 1, 1, 32>}, {transform_indices = @transform_9, window_bounds = array<i64: 1, 1, 32>}, {transform_indices = @transform_10, window_bounds = array<i64: 1, 32, 64>}, {transform_indices = @transform_11, window_bounds = array<i64: 1, 1, 64>}, {transform_indices = @transform_12, window_bounds = array<i64: 1, 64, 32>}, {transform_indices = @transform_13, window_bounds = array<i64: 1, 1, 32>}, {transform_indices = @transform_14, window_bounds = array<i64: 1, 1, 32>}, {transform_indices = @transform_15, window_bounds = array<i64: 1, 1, 32>}, {transform_indices = @transform_16, window_bounds = array<i64: 1, 1, 32>}]} {
    %c0_i32 = arith.constant 0 : i32
    %0 = arith.cmpi eq, %arg1, %c0_i32 : i32
    %1 = arith.extui %0 : i1 to i32
    %c0_i32_0 = arith.constant 0 : i32
    %2 = arith.cmpi ne, %1, %c0_i32_0 : i32
    scf.if %2 {
      %c0_71 = arith.constant 0 : index
      %c0_72 = arith.constant 0 : index
      %c0_73 = arith.constant 0 : index
      %c0_74 = arith.constant 0 : index
      %157 = vector.load %arg2[%c0_71, %c0_72, %c0_73, %c0_74] : memref<1x1x8x32xf32, #tpu.memory_space<vmem>>, vector<1x1x8x32xf32>
      %158 = vector.shape_cast %157 : vector<1x1x8x32xf32> to vector<1x8x32xf32>
      %159 = vector.shape_cast %158 : vector<1x8x32xf32> to vector<8x32xf32>
      %c0_75 = arith.constant 0 : index
      %c0_76 = arith.constant 0 : index
      %160 = vector.load %arg4[%c0_75, %c0_76] : memref<1x32xf32, #tpu.memory_space<vmem>>, vector<1x32xf32>
      %c0_77 = arith.constant 0 : index
      %c0_78 = arith.constant 0 : index
      %161 = vector.load %arg5[%c0_77, %c0_78] : memref<1x32xf32, #tpu.memory_space<vmem>>, vector<1x32xf32>
      %cst_79 = arith.constant dense<0.000000e+00> : vector<8xf32>
      %162 = vector.multi_reduction <add>, %159, %cst_79 [1] : vector<8x32xf32> to vector<8xf32>
      %163 = vector.shape_cast %162 : vector<8xf32> to vector<8x1xf32>
      %cst_80 = arith.constant 3.200000e+01 : f32
      %164 = vector.broadcast %cst_80 : f32 to vector<8x1xf32>
      %165 = arith.divf %163, %164 : vector<8x1xf32>
      %166 = arith.mulf %159, %159 : vector<8x32xf32>
      %cst_81 = arith.constant dense<0.000000e+00> : vector<8xf32>
      %167 = vector.multi_reduction <add>, %166, %cst_81 [1] : vector<8x32xf32> to vector<8xf32>
      %168 = vector.shape_cast %167 : vector<8xf32> to vector<8x1xf32>
      %cst_82 = arith.constant 3.200000e+01 : f32
      %169 = vector.broadcast %cst_82 : f32 to vector<8x1xf32>
      %170 = arith.divf %168, %169 : vector<8x1xf32>
      %171 = arith.mulf %165, %165 : vector<8x1xf32>
      %172 = arith.subf %170, %171 : vector<8x1xf32>
      %cst_83 = arith.constant 0.000000e+00 : f32
      %173 = vector.broadcast %cst_83 : f32 to vector<8x1xf32>
      %174 = arith.maximumf %172, %173 : vector<8x1xf32>
      %175 = vector.broadcast %165 : vector<8x1xf32> to vector<8x32xf32>
      %176 = arith.subf %159, %175 : vector<8x32xf32>
      %cst_84 = arith.constant 9.99999996E-13 : f32
      %177 = vector.broadcast %cst_84 : f32 to vector<8x1xf32>
      %178 = arith.addf %174, %177 : vector<8x1xf32>
      %179 = math.rsqrt %178 : vector<8x1xf32>
      %180 = vector.broadcast %179 : vector<8x1xf32> to vector<8x32xf32>
      %181 = arith.mulf %176, %180 : vector<8x32xf32>
      %182 = vector.broadcast %160 : vector<1x32xf32> to vector<8x32xf32>
      %183 = arith.mulf %181, %182 : vector<8x32xf32>
      %184 = vector.broadcast %161 : vector<1x32xf32> to vector<8x32xf32>
      %185 = arith.addf %183, %184 : vector<8x32xf32>
      %c0_85 = arith.constant 0 : index
      %c0_86 = arith.constant 0 : index
      %186 = vector.load %arg19[%c0_85, %c0_86] : memref<8x32xf32, #tpu.memory_space<vmem>>, vector<8x32xf32>
      tpu.vector_store %arg19[%c0_85, %c0_86], %185 {strides = array<i32>} : memref<8x32xf32, #tpu.memory_space<vmem>>, vector<8x32xf32>,
    } else {
    }
    %c0 = arith.constant 0 : index
    %c0_1 = arith.constant 0 : index
    %3 = vector.load %arg19[%c0, %c0_1] : memref<8x32xf32, #tpu.memory_space<vmem>>, vector<8x32xf32>
    %4 = arith.truncf %3 : vector<8x32xf32> to vector<8x32xbf16>
    %c0_2 = arith.constant 0 : index
    %c0_3 = arith.constant 0 : index
    %c0_4 = arith.constant 0 : index
    %5 = vector.load %arg6[%c0_2, %c0_3, %c0_4] : memref<1x32x96xbf16, #tpu.memory_space<vmem>>, vector<1x32x96xbf16>
    %6 = vector.shape_cast %5 : vector<1x32x96xbf16> to vector<32x96xbf16>
    %cst = arith.constant dense<0.000000e+00> : vector<8x96xf32>
    %7 = tpu.matmul %4, %6, %cst {dimension_numbers = #tpu.dot_dimension_numbers<[1], [0], [0], [1], [0, 0, 1, 1], [], []>} : vector<8x32xbf16>, vector<32x96xbf16>, vector<8x96xf32> -> vector<8x96xf32>
    %c0_5 = arith.constant 0 : index
    %c0_6 = arith.constant 0 : index
    %c0_7 = arith.constant 0 : index
    %8 = vector.load %arg7[%c0_5, %c0_6, %c0_7] : memref<1x1x96xf32, #tpu.memory_space<vmem>>, vector<1x1x96xf32>
    %9 = vector.shape_cast %8 : vector<1x1x96xf32> to vector<1x96xf32>
    %10 = vector.broadcast %9 : vector<1x96xf32> to vector<8x96xf32>
    %11 = arith.addf %7, %10 : vector<8x96xf32>
    %12 = vector.extract_strided_slice %11 {offsets = [0, 0], sizes = [8, 32], strides = [1, 1]} : vector<8x96xf32> to vector<8x32xf32>
    %cst_8 = arith.constant 2.500000e-01 : f32
    %13 = vector.broadcast %cst_8 : f32 to vector<8x32xf32>
    %14 = arith.mulf %12, %13 : vector<8x32xf32>
    %15 = vector.extract_strided_slice %11 {offsets = [0, 32], sizes = [8, 32], strides = [1, 1]} : vector<8x96xf32> to vector<8x32xf32>
    %16 = vector.extract_strided_slice %11 {offsets = [0, 64], sizes = [8, 32], strides = [1, 1]} : vector<8x96xf32> to vector<8x32xf32>
    %17 = vector.shape_cast %14 : vector<8x32xf32> to vector<1x8x2x16xf32>
    %18 = tpu.transpose %17, [0, 2, 1, 3] : vector<1x8x2x16xf32> -> vector<1x2x8x16xf32>
    %19 = vector.shape_cast %18 : vector<1x2x8x16xf32> to vector<2x8x16xf32>
    %20 = arith.truncf %19 : vector<2x8x16xf32> to vector<2x8x16xbf16>
    %21 = vector.shape_cast %15 : vector<8x32xf32> to vector<1x8x2x16xf32>
    %22 = tpu.transpose %21, [0, 2, 1, 3] : vector<1x8x2x16xf32> -> vector<1x2x8x16xf32>
    %23 = vector.shape_cast %22 : vector<1x2x8x16xf32> to vector<2x8x16xf32>
    %24 = arith.truncf %23 : vector<2x8x16xf32> to vector<2x8x16xbf16>
    %25 = vector.shape_cast %16 : vector<8x32xf32> to vector<1x8x2x16xf32>
    %26 = tpu.transpose %25, [0, 2, 1, 3] : vector<1x8x2x16xf32> -> vector<1x2x8x16xf32>
    %27 = vector.shape_cast %26 : vector<1x2x8x16xf32> to vector<2x8x16xf32>
    %28 = arith.truncf %27 : vector<2x8x16xf32> to vector<2x8x16xbf16>
    "tpu.trace_start"() <{level = 10 : i32, message = "gqd,gkd->gqk"}> : () -> ()
    %cst_9 = arith.constant dense<0.000000e+00> : vector<2x8x8xf32>
    %29 = tpu.matmul %20, %24, %cst_9 {dimension_numbers = #tpu.dot_dimension_numbers<[2], [2], [1], [1], [0, 0, 0, 1, 1, 1], [0], [0]>} : vector<2x8x16xbf16>, vector<2x8x16xbf16>, vector<2x8x8xf32> -> vector<2x8x8xf32>
    "tpu.trace_stop"() : () -> ()
    %c0_10 = arith.constant 0 : index
    %c0_11 = arith.constant 0 : index
    %c0_12 = arith.constant 0 : index
    %30 = vector.load %arg3[%c0_10, %c0_11, %c0_12] : memref<1x1x8xf32, #tpu.memory_space<vmem>>, vector<1x1x8xf32>
    %31 = vector.shape_cast %30 : vector<1x1x8xf32> to vector<1x8xf32>
    %cst_13 = arith.constant 5.000000e-01 : f32
    %32 = vector.broadcast %cst_13 : f32 to vector<1x8xf32>
    %33 = arith.cmpf ogt, %31, %32 : vector<1x8xf32>
    %cst_14 = arith.constant 0.000000e+00 : f32
    %cst_15 = arith.constant -1.000000e+09 : f32
    %34 = vector.broadcast %cst_14 : f32 to vector<1x8xf32>
    %35 = vector.broadcast %cst_15 : f32 to vector<1x8xf32>
    %36 = arith.select %33, %34, %35 : vector<1x8xi1>, vector<1x8xf32>
    %37 = vector.shape_cast %36 : vector<1x8xf32> to vector<1x1x1x8xf32>
    %38 = vector.shape_cast %37 : vector<1x1x1x8xf32> to vector<1x1x1x8xf32>
    %39 = vector.broadcast %38 : vector<1x1x1x8xf32> to vector<1x2x1x8xf32>
    %40 = vector.shape_cast %39 : vector<1x2x1x8xf32> to vector<2x1x8xf32>
    %41 = vector.broadcast %40 : vector<2x1x8xf32> to vector<2x8x8xf32>
    %42 = arith.addf %29, %41 : vector<2x8x8xf32>
    %cst_16 = arith.constant dense<0xFF800000> : vector<2x8xf32>
    %43 = vector.multi_reduction <maximumf>, %42, %cst_16 [2] : vector<2x8x8xf32> to vector<2x8xf32>
    %44 = vector.shape_cast %43 : vector<2x8xf32> to vector<2x8x1xf32>
    %45 = vector.broadcast %44 : vector<2x8x1xf32> to vector<2x8x8xf32>
    %46 = arith.subf %42, %45 : vector<2x8x8xf32>
    %47 = math.exp %46 : vector<2x8x8xf32>
    %cst_17 = arith.constant dense<0.000000e+00> : vector<2x8xf32>
    %48 = vector.multi_reduction <add>, %47, %cst_17 [2] : vector<2x8x8xf32> to vector<2x8xf32>
    %49 = vector.shape_cast %48 : vector<2x8xf32> to vector<2x8x1xf32>
    %50 = tpu.reciprocal %49 {approx = true} : vector<2x8x1xf32> -> vector<2x8x1xf32>
    %51 = vector.broadcast %50 : vector<2x8x1xf32> to vector<2x8x8xf32>
    %52 = arith.mulf %47, %51 : vector<2x8x8xf32>
    %53 = arith.truncf %52 : vector<2x8x8xf32> to vector<2x8x8xbf16>
    "tpu.trace_start"() <{level = 10 : i32, message = "gqk,gkd->gqd"}> : () -> ()
    %cst_18 = arith.constant dense<0.000000e+00> : vector<2x8x16xf32>
    %54 = tpu.matmul %53, %28, %cst_18 {dimension_numbers = #tpu.dot_dimension_numbers<[2], [1], [1], [2], [0, 0, 0, 1, 1, 2], [0], [0]>} : vector<2x8x8xbf16>, vector<2x8x16xbf16>, vector<2x8x16xf32> -> vector<2x8x16xf32>
    "tpu.trace_stop"() : () -> ()
    %55 = vector.shape_cast %54 : vector<2x8x16xf32> to vector<1x2x8x16xf32>
    %56 = tpu.transpose %55, [0, 2, 1, 3] : vector<1x2x8x16xf32> -> vector<1x8x2x16xf32>
    %57 = vector.shape_cast %56 : vector<1x8x2x16xf32> to vector<8x32xf32>
    %58 = arith.truncf %57 : vector<8x32xf32> to vector<8x32xbf16>
    %c0_19 = arith.constant 0 : index
    %c0_20 = arith.constant 0 : index
    %c0_21 = arith.constant 0 : index
    %59 = vector.load %arg8[%c0_19, %c0_20, %c0_21] : memref<1x32x32xbf16, #tpu.memory_space<vmem>>, vector<1x32x32xbf16>
    %60 = vector.shape_cast %59 : vector<1x32x32xbf16> to vector<32x32xbf16>
    %cst_22 = arith.constant dense<0.000000e+00> : vector<8x32xf32>
    %61 = tpu.matmul %58, %60, %cst_22 {dimension_numbers = #tpu.dot_dimension_numbers<[1], [0], [0], [1], [0, 0, 1, 1], [], []>} : vector<8x32xbf16>, vector<32x32xbf16>, vector<8x32xf32> -> vector<8x32xf32>
    %c0_23 = arith.constant 0 : index
    %c0_24 = arith.constant 0 : index
    %c0_25 = arith.constant 0 : index
    %62 = vector.load %arg9[%c0_23, %c0_24, %c0_25] : memref<1x1x32xf32, #tpu.memory_space<vmem>>, vector<1x1x32xf32>
    %63 = vector.shape_cast %62 : vector<1x1x32xf32> to vector<1x32xf32>
    %64 = vector.broadcast %63 : vector<1x32xf32> to vector<8x32xf32>
    %65 = arith.addf %61, %64 : vector<8x32xf32>
    %66 = arith.addf %3, %65 : vector<8x32xf32>
    %c0_26 = arith.constant 0 : index
    %c0_27 = arith.constant 0 : index
    %c0_28 = arith.constant 0 : index
    %67 = vector.load %arg10[%c0_26, %c0_27, %c0_28] : memref<1x1x32xf32, #tpu.memory_space<vmem>>, vector<1x1x32xf32>
    %68 = vector.shape_cast %67 : vector<1x1x32xf32> to vector<1x32xf32>
    %c0_29 = arith.constant 0 : index
    %c0_30 = arith.constant 0 : index
    %c0_31 = arith.constant 0 : index
    %69 = vector.load %arg11[%c0_29, %c0_30, %c0_31] : memref<1x1x32xf32, #tpu.memory_space<vmem>>, vector<1x1x32xf32>
    %70 = vector.shape_cast %69 : vector<1x1x32xf32> to vector<1x32xf32>
    %cst_32 = arith.constant dense<0.000000e+00> : vector<8xf32>
    %71 = vector.multi_reduction <add>, %66, %cst_32 [1] : vector<8x32xf32> to vector<8xf32>
    %72 = vector.shape_cast %71 : vector<8xf32> to vector<8x1xf32>
    %cst_33 = arith.constant 3.200000e+01 : f32
    %73 = vector.broadcast %cst_33 : f32 to vector<8x1xf32>
    %74 = arith.divf %72, %73 : vector<8x1xf32>
    %75 = arith.mulf %66, %66 : vector<8x32xf32>
    %cst_34 = arith.constant dense<0.000000e+00> : vector<8xf32>
    %76 = vector.multi_reduction <add>, %75, %cst_34 [1] : vector<8x32xf32> to vector<8xf32>
    %77 = vector.shape_cast %76 : vector<8xf32> to vector<8x1xf32>
    %cst_35 = arith.constant 3.200000e+01 : f32
    %78 = vector.broadcast %cst_35 : f32 to vector<8x1xf32>
    %79 = arith.divf %77, %78 : vector<8x1xf32>
    %80 = arith.mulf %74, %74 : vector<8x1xf32>
    %81 = arith.subf %79, %80 : vector<8x1xf32>
    %cst_36 = arith.constant 0.000000e+00 : f32
    %82 = vector.broadcast %cst_36 : f32 to vector<8x1xf32>
    %83 = arith.maximumf %81, %82 : vector<8x1xf32>
    %84 = vector.broadcast %74 : vector<8x1xf32> to vector<8x32xf32>
    %85 = arith.subf %66, %84 : vector<8x32xf32>
    %cst_37 = arith.constant 9.99999996E-13 : f32
    %86 = vector.broadcast %cst_37 : f32 to vector<8x1xf32>
    %87 = arith.addf %83, %86 : vector<8x1xf32>
    %88 = math.rsqrt %87 : vector<8x1xf32>
    %89 = vector.broadcast %88 : vector<8x1xf32> to vector<8x32xf32>
    %90 = arith.mulf %85, %89 : vector<8x32xf32>
    %91 = vector.broadcast %68 : vector<1x32xf32> to vector<8x32xf32>
    %92 = arith.mulf %90, %91 : vector<8x32xf32>
    %93 = vector.broadcast %70 : vector<1x32xf32> to vector<8x32xf32>
    %94 = arith.addf %92, %93 : vector<8x32xf32>
    %95 = arith.truncf %94 : vector<8x32xf32> to vector<8x32xbf16>
    %c0_38 = arith.constant 0 : index
    %c0_39 = arith.constant 0 : index
    %c0_40 = arith.constant 0 : index
    %96 = vector.load %arg12[%c0_38, %c0_39, %c0_40] : memref<1x32x64xbf16, #tpu.memory_space<vmem>>, vector<1x32x64xbf16>
    %97 = vector.shape_cast %96 : vector<1x32x64xbf16> to vector<32x64xbf16>
    %cst_41 = arith.constant dense<0.000000e+00> : vector<8x64xf32>
    %98 = tpu.matmul %95, %97, %cst_41 {dimension_numbers = #tpu.dot_dimension_numbers<[1], [0], [0], [1], [0, 0, 1, 1], [], []>} : vector<8x32xbf16>, vector<32x64xbf16>, vector<8x64xf32> -> vector<8x64xf32>
    %c0_42 = arith.constant 0 : index
    %c0_43 = arith.constant 0 : index
    %c0_44 = arith.constant 0 : index
    %99 = vector.load %arg13[%c0_42, %c0_43, %c0_44] : memref<1x1x64xf32, #tpu.memory_space<vmem>>, vector<1x1x64xf32>
    %100 = vector.shape_cast %99 : vector<1x1x64xf32> to vector<1x64xf32>
    %101 = vector.broadcast %100 : vector<1x64xf32> to vector<8x64xf32>
    %102 = arith.addf %98, %101 : vector<8x64xf32>
    %103 = arith.mulf %102, %102 : vector<8x64xf32>
    %104 = arith.mulf %102, %103 : vector<8x64xf32>
    %cst_45 = arith.constant 4.471500e-02 : f32
    %105 = vector.broadcast %cst_45 : f32 to vector<8x64xf32>
    %106 = arith.mulf %105, %104 : vector<8x64xf32>
    %107 = arith.addf %102, %106 : vector<8x64xf32>
    %cst_46 = arith.constant 0.797884583 : f32
    %108 = vector.broadcast %cst_46 : f32 to vector<8x64xf32>
    %109 = arith.mulf %108, %107 : vector<8x64xf32>
    %110 = math.tanh %109 : vector<8x64xf32>
    %cst_47 = arith.constant 1.000000e+00 : f32
    %111 = vector.broadcast %cst_47 : f32 to vector<8x64xf32>
    %112 = arith.addf %111, %110 : vector<8x64xf32>
    %cst_48 = arith.constant 5.000000e-01 : f32
    %113 = vector.broadcast %cst_48 : f32 to vector<8x64xf32>
    %114 = arith.mulf %113, %112 : vector<8x64xf32>
    %115 = arith.mulf %102, %114 : vector<8x64xf32>
    %116 = arith.truncf %115 : vector<8x64xf32> to vector<8x64xbf16>
    %c0_49 = arith.constant 0 : index
    %c0_50 = arith.constant 0 : index
    %c0_51 = arith.constant 0 : index
    %117 = vector.load %arg14[%c0_49, %c0_50, %c0_51] : memref<1x64x32xbf16, #tpu.memory_space<vmem>>, vector<1x64x32xbf16>
    %118 = vector.shape_cast %117 : vector<1x64x32xbf16> to vector<64x32xbf16>
    %cst_52 = arith.constant dense<0.000000e+00> : vector<8x32xf32>
    %119 = tpu.matmul %116, %118, %cst_52 {dimension_numbers = #tpu.dot_dimension_numbers<[1], [0], [0], [1], [0, 0, 1, 1], [], []>} : vector<8x64xbf16>, vector<64x32xbf16>, vector<8x32xf32> -> vector<8x32xf32>
    %c0_53 = arith.constant 0 : index
    %c0_54 = arith.constant 0 : index
    %c0_55 = arith.constant 0 : index
    %120 = vector.load %arg15[%c0_53, %c0_54, %c0_55] : memref<1x1x32xf32, #tpu.memory_space<vmem>>, vector<1x1x32xf32>
    %121 = vector.shape_cast %120 : vector<1x1x32xf32> to vector<1x32xf32>
    %122 = vector.broadcast %121 : vector<1x32xf32> to vector<8x32xf32>
    %123 = arith.addf %119, %122 : vector<8x32xf32>
    %124 = arith.addf %94, %123 : vector<8x32xf32>
    %c0_56 = arith.constant 0 : index
    %c0_57 = arith.constant 0 : index
    %c0_58 = arith.constant 0 : index
    %125 = vector.load %arg16[%c0_56, %c0_57, %c0_58] : memref<1x1x32xf32, #tpu.memory_space<vmem>>, vector<1x1x32xf32>
    %126 = vector.shape_cast %125 : vector<1x1x32xf32> to vector<1x32xf32>
    %c0_59 = arith.constant 0 : index
    %c0_60 = arith.constant 0 : index
    %c0_61 = arith.constant 0 : index
    %127 = vector.load %arg17[%c0_59, %c0_60, %c0_61] : memref<1x1x32xf32, #tpu.memory_space<vmem>>, vector<1x1x32xf32>
    %128 = vector.shape_cast %127 : vector<1x1x32xf32> to vector<1x32xf32>
    %cst_62 = arith.constant dense<0.000000e+00> : vector<8xf32>
    %129 = vector.multi_reduction <add>, %124, %cst_62 [1] : vector<8x32xf32> to vector<8xf32>
    %130 = vector.shape_cast %129 : vector<8xf32> to vector<8x1xf32>
    %cst_63 = arith.constant 3.200000e+01 : f32
    %131 = vector.broadcast %cst_63 : f32 to vector<8x1xf32>
    %132 = arith.divf %130, %131 : vector<8x1xf32>
    %133 = arith.mulf %124, %124 : vector<8x32xf32>
    %cst_64 = arith.constant dense<0.000000e+00> : vector<8xf32>
    %134 = vector.multi_reduction <add>, %133, %cst_64 [1] : vector<8x32xf32> to vector<8xf32>
    %135 = vector.shape_cast %134 : vector<8xf32> to vector<8x1xf32>
    %cst_65 = arith.constant 3.200000e+01 : f32
    %136 = vector.broadcast %cst_65 : f32 to vector<8x1xf32>
    %137 = arith.divf %135, %136 : vector<8x1xf32>
    %138 = arith.mulf %132, %132 : vector<8x1xf32>
    %139 = arith.subf %137, %138 : vector<8x1xf32>
    %cst_66 = arith.constant 0.000000e+00 : f32
    %140 = vector.broadcast %cst_66 : f32 to vector<8x1xf32>
    %141 = arith.maximumf %139, %140 : vector<8x1xf32>
    %142 = vector.broadcast %132 : vector<8x1xf32> to vector<8x32xf32>
    %143 = arith.subf %124, %142 : vector<8x32xf32>
    %cst_67 = arith.constant 9.99999996E-13 : f32
    %144 = vector.broadcast %cst_67 : f32 to vector<8x1xf32>
    %145 = arith.addf %141, %144 : vector<8x1xf32>
    %146 = math.rsqrt %145 : vector<8x1xf32>
    %147 = vector.broadcast %146 : vector<8x1xf32> to vector<8x32xf32>
    %148 = arith.mulf %143, %147 : vector<8x32xf32>
    %149 = vector.broadcast %126 : vector<1x32xf32> to vector<8x32xf32>
    %150 = arith.mulf %148, %149 : vector<8x32xf32>
    %151 = vector.broadcast %128 : vector<1x32xf32> to vector<8x32xf32>
    %152 = arith.addf %150, %151 : vector<8x32xf32>
    %c0_68 = arith.constant 0 : index
    %c0_69 = arith.constant 0 : index
    %153 = vector.load %arg19[%c0_68, %c0_69] : memref<8x32xf32, #tpu.memory_space<vmem>>, vector<8x32xf32>
    tpu.vector_store %arg19[%c0_68, %c0_69], %152 {strides = array<i32>} : memref<8x32xf32, #tpu.memory_space<vmem>>, vector<8x32xf32>,
    %c1_i32 = arith.constant 1 : i32
    %154 = arith.cmpi eq, %arg1, %c1_i32 : i32
    %155 = arith.extui %154 : i1 to i32
    %c0_i32_70 = arith.constant 0 : i32
    %156 = arith.cmpi ne, %155, %c0_i32_70 : i32
    scf.if %156 {
      %c0_71 = arith.constant 0 : index
      %c0_72 = arith.constant 0 : index
      %157 = tpu.strided_load %arg19[%c0_71, %c0_72] {strides = array<i32: 8, 1>} : memref<8x32xf32, #tpu.memory_space<vmem>>, vector<1x32xf32>
      %c0_73 = arith.constant 0 : index
      %c0_74 = arith.constant 0 : index
      %c0_75 = arith.constant 0 : index
      %158 = vector.load %arg18[%c0_73, %c0_74, %c0_75] : memref<1x1x32xf32, #tpu.memory_space<vmem>>, vector<1x1x32xf32>
      %159 = vector.shape_cast %158 : vector<1x1x32xf32> to vector<1x32xf32>
      %160 = vector.shape_cast %157 : vector<1x32xf32> to vector<1x1x32xf32>
      tpu.vector_store %arg18[%c0_73, %c0_74, %c0_75], %160 {strides = array<i32>} : memref<1x1x32xf32, #tpu.memory_space<vmem>>, vector<1x1x32xf32>,
    } else {
    }
    return
  }
  func.func @transform_0(%arg0: i32, %arg1: i32) -> (i32, i32, i32, i32) {
    %c0_i32 = arith.constant 0 : i32
    %c0_i32_0 = arith.constant 0 : i32
    %c0_i32_1 = arith.constant 0 : i32
    %c0_i32_2 = arith.constant 0 : i32
    return %arg0, %c0_i32, %c0_i32_0, %c0_i32_1 : i32, i32, i32, i32
  }
  func.func @transform_1(%arg0: i32, %arg1: i32) -> (i32, i32, i32) {
    %c0_i32 = arith.constant 0 : i32
    %c0_i32_0 = arith.constant 0 : i32
    %c0_i32_1 = arith.constant 0 : i32
    return %arg0, %c0_i32, %c0_i32_0 : i32, i32, i32
  }
  func.func @transform_2(%arg0: i32, %arg1: i32) -> (i32, i32) {
    %c0_i32 = arith.constant 0 : i32
    %c0_i32_0 = arith.constant 0 : i32
    %c0_i32_1 = arith.constant 0 : i32
    return %c0_i32, %c0_i32_0 : i32, i32
  }
  func.func @transform_3(%arg0: i32, %arg1: i32) -> (i32, i32) {
    %c0_i32 = arith.constant 0 : i32
    %c0_i32_0 = arith.constant 0 : i32
    %c0_i32_1 = arith.constant 0 : i32
    return %c0_i32, %c0_i32_0 : i32, i32
  }
  func.func @transform_4(%arg0: i32, %arg1: i32) -> (i32, i32, i32) {
    %c0_i32 = arith.constant 0 : i32
    %c0_i32_0 = arith.constant 0 : i32
    %c0_i32_1 = arith.constant 0 : i32
    return %arg1, %c0_i32, %c0_i32_0 : i32, i32, i32
  }
  func.func @transform_5(%arg0: i32, %arg1: i32) -> (i32, i32, i32) {
    %c0_i32 = arith.constant 0 : i32
    %c0_i32_0 = arith.constant 0 : i32
    %c0_i32_1 = arith.constant 0 : i32
    return %arg1, %c0_i32, %c0_i32_0 : i32, i32, i32
  }
  func.func @transform_6(%arg0: i32, %arg1: i32) -> (i32, i32, i32) {
    %c0_i32 = arith.constant 0 : i32
    %c0_i32_0 = arith.constant 0 : i32
    %c0_i32_1 = arith.constant 0 : i32
    return %arg1, %c0_i32, %c0_i32_0 : i32, i32, i32
  }
  func.func @transform_7(%arg0: i32, %arg1: i32) -> (i32, i32, i32) {
    %c0_i32 = arith.constant 0 : i32
    %c0_i32_0 = arith.constant 0 : i32
    %c0_i32_1 = arith.constant 0 : i32
    return %arg1, %c0_i32, %c0_i32_0 : i32, i32, i32
  }
  func.func @transform_8(%arg0: i32, %arg1: i32) -> (i32, i32, i32) {
    %c0_i32 = arith.constant 0 : i32
    %c0_i32_0 = arith.constant 0 : i32
    %c0_i32_1 = arith.constant 0 : i32
    return %arg1, %c0_i32, %c0_i32_0 : i32, i32, i32
  }
  func.func @transform_9(%arg0: i32, %arg1: i32) -> (i32, i32, i32) {
    %c0_i32 = arith.constant 0 : i32
    %c0_i32_0 = arith.constant 0 : i32
    %c0_i32_1 = arith.constant 0 : i32
    return %arg1, %c0_i32, %c0_i32_0 : i32, i32, i32
  }
  func.func @transform_10(%arg0: i32, %arg1: i32) -> (i32, i32, i32) {
    %c0_i32 = arith.constant 0 : i32
    %c0_i32_0 = arith.constant 0 : i32
    %c0_i32_1 = arith.constant 0 : i32
    return %arg1, %c0_i32, %c0_i32_0 : i32, i32, i32
  }
  func.func @transform_11(%arg0: i32, %arg1: i32) -> (i32, i32, i32) {
    %c0_i32 = arith.constant 0 : i32
    %c0_i32_0 = arith.constant 0 : i32
    %c0_i32_1 = arith.constant 0 : i32
    return %arg1, %c0_i32, %c0_i32_0 : i32, i32, i32
  }
  func.func @transform_12(%arg0: i32, %arg1: i32) -> (i32, i32, i32) {
    %c0_i32 = arith.constant 0 : i32
    %c0_i32_0 = arith.constant 0 : i32
    %c0_i32_1 = arith.constant 0 : i32
    return %arg1, %c0_i32, %c0_i32_0 : i32, i32, i32
  }
  func.func @transform_13(%arg0: i32, %arg1: i32) -> (i32, i32, i32) {
    %c0_i32 = arith.constant 0 : i32
    %c0_i32_0 = arith.constant 0 : i32
    %c0_i32_1 = arith.constant 0 : i32
    return %arg1, %c0_i32, %c0_i32_0 : i32, i32, i32
  }
  func.func @transform_14(%arg0: i32, %arg1: i32) -> (i32, i32, i32) {
    %c0_i32 = arith.constant 0 : i32
    %c0_i32_0 = arith.constant 0 : i32
    %c0_i32_1 = arith.constant 0 : i32
    return %arg1, %c0_i32, %c0_i32_0 : i32, i32, i32
  }
  func.func @transform_15(%arg0: i32, %arg1: i32) -> (i32, i32, i32) {
    %c0_i32 = arith.constant 0 : i32
    %c0_i32_0 = arith.constant 0 : i32
    %c0_i32_1 = arith.constant 0 : i32
    return %arg1, %c0_i32, %c0_i32_0 : i32, i32, i32
  }
  func.func @transform_16(%arg0: i32, %arg1: i32) -> (i32, i32, i32) {
    %c0_i32 = arith.constant 0 : i32
    %c0_i32_0 = arith.constant 0 : i32
    %c0_i32_1 = arith.constant 0 : i32
    return %arg0, %c0_i32, %c0_i32_0 : i32, i32, i32
  }
}

</mosaic_0001>

<llo_original>
// kernel: tpu_custom_call.1
$region0: #{tpu_custom_call.1}
  #allocation0 [shape = 'u32[]', space=smem, size = 0x4, offset = 0x4, fixed_abs, tag = 'smem constant byte address 0x4 - core index']
  #allocation1 [shape = 'u32[144,128]{1,0:T(1,128)}', space=vmem, size = 0x12000, scoped, tag = 'internal scratch']
  #allocation2 [shape = 'f32[8,32]{1,0:T(8,128)}', space=vmem, size = 0x1000, scoped, tag = 'scratch operand']
  %s0 = inlined_call_operand.hbm [shape: f32[2,1,8,32], index: 0, kind: input, shape index: {}]
  %s1 = inlined_call_operand.vmem [shape: f32[2,1,8], index: 1, kind: input, shape index: {}]
  %s2 = inlined_call_operand.vmem [shape: f32[1,32], index: 2, kind: input, shape index: {}]
  %s3 = inlined_call_operand.hbm [shape: f32[1,32], index: 3, kind: input, shape index: {}]
  %s4 = inlined_call_operand.vmem [shape: bf16[2,32,96], index: 4, kind: input, shape index: {}]
  %s5 = inlined_call_operand.vmem [shape: f32[2,1,96], index: 5, kind: input, shape index: {}]
  %s6 = inlined_call_operand.vmem [shape: bf16[2,32,32], index: 6, kind: input, shape index: {}]
  %s7 = inlined_call_operand.vmem [shape: f32[2,1,32], index: 7, kind: input, shape index: {}]
  %s8 = inlined_call_operand.vmem [shape: f32[2,1,32], index: 8, kind: input, shape index: {}]
  %s9 = inlined_call_operand.vmem [shape: f32[2,1,32], index: 9, kind: input, shape index: {}]
  %s10 = inlined_call_operand.vmem [shape: bf16[2,32,64], index: 10, kind: input, shape index: {}]
  %s11 = inlined_call_operand.vmem [shape: f32[2,1,64], index: 11, kind: input, shape index: {}]
  %s12 = inlined_call_operand.vmem [shape: bf16[2,64,32], index: 12, kind: input, shape index: {}]
  %s13 = inlined_call_operand.vmem [shape: f32[2,1,32], index: 13, kind: input, shape index: {}]
  %s14 = inlined_call_operand.vmem [shape: f32[2,1,32], index: 14, kind: input, shape index: {}]
  %s15 = inlined_call_operand.vmem [shape: f32[2,1,32], index: 15, kind: input, shape index: {}]
  %s16 = inlined_call_operand.hbm [shape: f32[2,1,32], index: 16, kind: output, shape index: {}]
  %s17 = sld [smem:[#allocation0]]
  $region113: #{tpu_custom_call.1} parent=0
    _
  %s19 = ssub.s32 1, %s17
  %s20 = scalar_select 0, %s19, %s17
  $region1: #{tpu_custom_call.1} parent=0
    #allocation3 [shape = 'u8[8192]{0}', space=vmem, size = 0x2000, scoped, tag = 'input window, operand 0']
    #allocation4 [shape = 's32[2]{0}', space=sflag, size = 0x8, scoped, tag = 'scoped memory for tpu_custom_call.1']
    #allocation5 [shape = 's32[2]{0}', space=sflag, size = 0x8, scoped, tag = 'scoped memory for tpu_custom_call.1']
    #allocation6 [shape = 'u8[512]{0}', space=vmem, size = 0x400, scoped, tag = 'input window, operand 3, single buffered']
    #allocation7 [shape = 's32[1]{0}', space=sflag, size = 0x4, scoped, tag = 'scoped memory for tpu_custom_call.1']
    #allocation8 [shape = 'u8[1024]{0}', space=vmem, size = 0x400, scoped, tag = 'output window, operand 0']
    %21 = vsyncpa [#allocation4], 0
    %s22 = scalar_lea.sflag [#allocation4], 1
    %23 = vsyncpa %s22, 0
    %24 = vsyncpa [#allocation7], 0
    %25 = vsyncpa [#allocation5], 0
    %s26 = scalar_lea.sflag [#allocation5], 1
    %27 = vsyncpa %s26, 0
    loop: start=0, step=1, limit=6
    $region2: #{tpu_custom_call.1} parent=1 // loop_pre_header
      _
    $region3: #{tpu_custom_call.1} parent=1 // loop_header
      %s29 = sphi 0, %s33
      %p30 = scmp.ge.s32.totalorder %s29, 6
      %s36 = sphi 0, %s48
      %s37 = sphi 0, %s44
      %s38 = sphi 0, %s36
      %s39 = sphi 0, %s37
      %s40 = sphi 0, %s38
      %s41 = sphi 0, %s39
      %s51 = sphi 0, %s53
      %s54 = sphi 0, %s51
      %s55 = sphi 0, %s54
      %s71 = sphi 0, %s55
      %s77 = sphi 0, %s79
      %s80 = sphi 0, %s77
      %s81 = sphi 0, %s80
      %s97 = sphi 0, %s81
      %s101 = sphi 0, %s101
      %s103 = sphi 0, %s101
      %s104 = sphi 0, %s103
      %s118 = sphi 0, %s104
      %s122 = sphi 0, %s122
      %s124 = sphi 0, %s122
      %s125 = sphi 0, %s124
      %s139 = sphi 0, %s125
      %s145 = sphi 0, %s147
      %s148 = sphi 0, %s145
      %s149 = sphi 0, %s148
      %s165 = sphi 0, %s149
      %s171 = sphi 0, %s173
      %s174 = sphi 0, %s171
      %s175 = sphi 0, %s174
      %s191 = sphi 0, %s175
      %s197 = sphi 0, %s199
      %s200 = sphi 0, %s197
      %s201 = sphi 0, %s200
      %s217 = sphi 0, %s201
      %s223 = sphi 0, %s225
      %s226 = sphi 0, %s223
      %s227 = sphi 0, %s226
      %s243 = sphi 0, %s227
      %s249 = sphi 0, %s251
      %s252 = sphi 0, %s249
      %s253 = sphi 0, %s252
      %s269 = sphi 0, %s253
      %s275 = sphi 0, %s277
      %s278 = sphi 0, %s275
      %s279 = sphi 0, %s278
      %s295 = sphi 0, %s279
      %s301 = sphi 0, %s303
      %s304 = sphi 0, %s301
      %s305 = sphi 0, %s304
      %s321 = sphi 0, %s305
      %s327 = sphi 0, %s329
      %s330 = sphi 0, %s327
      %s331 = sphi 0, %s330
      %s347 = sphi 0, %s331
      %s353 = sphi 0, %s355
      %s356 = sphi 0, %s353
      %s357 = sphi 0, %s356
      %s373 = sphi 0, %s357
      %s379 = sphi 0, %s381
      %s382 = sphi 0, %s379
      %s383 = sphi 0, %s382
      %s399 = sphi 0, %s383
      %s405 = sphi 0, %s407
      %s408 = sphi 0, %s405
      %s409 = sphi 0, %s408
      %s425 = sphi 0, %s409
      %s431 = sphi 0, %s433
      %s434 = sphi 0, %s431
      %s435 = sphi 0, %s434
      %s451 = sphi 0, %s435
      %s457 = sphi 0, %s459
      %s460 = sphi 0, %s457
      %s461 = sphi 0, %s460
      %s477 = sphi 0, %s461
    $region4: #{tpu_custom_call.1} parent=1 // loop_header_branch
      %32 = sbr.rel (%p30) target = $region8
    $region5: #{tpu_custom_call.1} parent=1 // loop_body
      %s34 = ssub.s32 %s29, 1
      %s35 = ssub.s32 %s29, 2
      %s42 = sadd.s32 1, %s37
      %p43 = scmp.ge.s32.totalorder %s42, 2
      %s44 = scalar_select %p43, 0, %s42
      %s45 = sadd.s32 1, %s36
      %s46 = scalar_select %p43, %s45, %s36
      %p47 = scmp.ge.s32.totalorder %s46, 2
      %s48 = scalar_select %p47, 0, %s46
      %s49 = ssub.s32 %s36, %s48
      %p50 = scmp.eq.s32.totalorder %s49, 0
      %s52 = sadd.s32 %s51, 1
      %s53 = scalar_select %p50, %s51, %s52
      %p56 = pneg %p50
      %p57 = scmp.eq.s32.totalorder %s29, 3
      %p58 = por %p56, %p57
      %p59 = scmp.ne.s32.totalorder %s51, %s54
      %p60 = scmp.eq.s32.totalorder %s29, 0
      %p61 = por %p59, %p60
      %p62 = scmp.ne.s32.totalorder %s51, %s54
      %p63 = scmp.eq.s32.totalorder %s34, 3
      %p64 = por %p62, %p63
      %p65 = scmp.ne.s32.totalorder %s54, %s55
      %p66 = scmp.eq.s32.totalorder %s34, 0
      %p67 = por %p65, %p66
      %p68 = scmp.ne.s32.totalorder %s54, %s55
      %p69 = scmp.eq.s32.totalorder %s35, 3
      %p70 = por %p68, %p69
      %p72 = scmp.ne.s32.totalorder %s55, %s71
      %p73 = scmp.eq.s32.totalorder %s35, 0
      %p74 = por %p72, %p73
      %s75 = ssub.s32 %s36, %s48
      %p76 = scmp.eq.s32.totalorder %s75, 0
      %s78 = sadd.s32 %s77, 1
      %s79 = scalar_select %p76, %s77, %s78
      %p82 = pneg %p76
      %p83 = scmp.eq.s32.totalorder %s29, 3
      %p84 = por %p82, %p83
      %p85 = scmp.ne.s32.totalorder %s77, %s80
      %p86 = scmp.eq.s32.totalorder %s29, 0
      %p87 = por %p85, %p86
      %p88 = scmp.ne.s32.totalorder %s77, %s80
      %p89 = scmp.eq.s32.totalorder %s34, 3
      %p90 = por %p88, %p89
      %p91 = scmp.ne.s32.totalorder %s80, %s81
      %p92 = scmp.eq.s32.totalorder %s34, 0
      %p93 = por %p91, %p92
      %p94 = scmp.ne.s32.totalorder %s80, %s81
      %p95 = scmp.eq.s32.totalorder %s35, 3
      %p96 = por %p94, %p95
      %p98 = scmp.ne.s32.totalorder %s81, %s97
      %p99 = scmp.eq.s32.totalorder %s35, 0
      %p100 = por %p98, %p99
      %s102 = sadd.s32 %s101, 1
      %p105 = scmp.eq.s32.totalorder %s29, 3
      %p106 = scmp.ne.s32.totalorder %s101, %s103
      %p107 = scmp.eq.s32.totalorder %s29, 0
      %p108 = por %p106, %p107
      %p109 = scmp.ne.s32.totalorder %s101, %s103
      %p110 = scmp.eq.s32.totalorder %s34, 3
      %p111 = por %p109, %p110
      %p112 = scmp.ne.s32.totalorder %s103, %s104
      %p113 = scmp.eq.s32.totalorder %s34, 0
      %p114 = por %p112, %p113
      %p115 = scmp.ne.s32.totalorder %s103, %s104
      %p116 = scmp.eq.s32.totalorder %s35, 3
      %p117 = por %p115, %p116
      %p119 = scmp.ne.s32.totalorder %s104, %s118
      %p120 = scmp.eq.s32.totalorder %s35, 0
      %p121 = por %p119, %p120
      %s123 = sadd.s32 %s122, 1
      %p126 = scmp.eq.s32.totalorder %s29, 3
      %p127 = scmp.ne.s32.totalorder %s122, %s124
      %p128 = scmp.eq.s32.totalorder %s29, 0
      %p129 = por %p127, %p128
      %p130 = scmp.ne.s32.totalorder %s122, %s124
      %p131 = scmp.eq.s32.totalorder %s34, 3
      %p132 = por %p130, %p131
      %p133 = scmp.ne.s32.totalorder %s124, %s125
      %p134 = scmp.eq.s32.totalorder %s34, 0
      %p135 = por %p133, %p134
      %p136 = scmp.ne.s32.totalorder %s124, %s125
      %p137 = scmp.eq.s32.totalorder %s35, 3
      %p138 = por %p136, %p137
      %p140 = scmp.ne.s32.totalorder %s125, %s139
      %p141 = scmp.eq.s32.totalorder %s35, 0
      %p142 = por %p140, %p141
      %s143 = ssub.s32 %s37, %s44
      %p144 = scmp.eq.s32.totalorder %s143, 0
      %s146 = sadd.s32 %s145, 1
      %s147 = scalar_select %p144, %s145, %s146
      %p150 = pneg %p144
      %p151 = scmp.eq.s32.totalorder %s29, 3
      %p152 = por %p150, %p151
      %p153 = scmp.ne.s32.totalorder %s145, %s148
      %p154 = scmp.eq.s32.totalorder %s29, 0
      %p155 = por %p153, %p154
      %p156 = scmp.ne.s32.totalorder %s145, %s148
      %p157 = scmp.eq.s32.totalorder %s34, 3
      %p158 = por %p156, %p157
      %p159 = scmp.ne.s32.totalorder %s148, %s149
      %p160 = scmp.eq.s32.totalorder %s34, 0
      %p161 = por %p159, %p160
      %p162 = scmp.ne.s32.totalorder %s148, %s149
      %p163 = scmp.eq.s32.totalorder %s35, 3
      %p164 = por %p162, %p163
      %p166 = scmp.ne.s32.totalorder %s149, %s165
      %p167 = scmp.eq.s32.totalorder %s35, 0
      %p168 = por %p166, %p167
      %s169 = ssub.s32 %s37, %s44
      %p170 = scmp.eq.s32.totalorder %s169, 0
      %s172 = sadd.s32 %s171, 1
      %s173 = scalar_select %p170, %s171, %s172
      %p176 = pneg %p170
      %p177 = scmp.eq.s32.totalorder %s29, 3
      %p178 = por %p176, %p177
      %p179 = scmp.ne.s32.totalorder %s171, %s174
      %p180 = scmp.eq.s32.totalorder %s29, 0
      %p181 = por %p179, %p180
      %p182 = scmp.ne.s32.totalorder %s171, %s174
      %p183 = scmp.eq.s32.totalorder %s34, 3
      %p184 = por %p182, %p183
      %p185 = scmp.ne.s32.totalorder %s174, %s175
      %p186 = scmp.eq.s32.totalorder %s34, 0
      %p187 = por %p185, %p186
      %p188 = scmp.ne.s32.totalorder %s174, %s175
      %p189 = scmp.eq.s32.totalorder %s35, 3
      %p190 = por %p188, %p189
      %p192 = scmp.ne.s32.totalorder %s175, %s191
      %p193 = scmp.eq.s32.totalorder %s35, 0
      %p194 = por %p192, %p193
      %s195 = ssub.s32 %s37, %s44
      %p196 = scmp.eq.s32.totalorder %s195, 0
      %s198 = sadd.s32 %s197, 1
      %s199 = scalar_select %p196, %s197, %s198
      %p202 = pneg %p196
      %p203 = scmp.eq.s32.totalorder %s29, 3
      %p204 = por %p202, %p203
      %p205 = scmp.ne.s32.totalorder %s197, %s200
      %p206 = scmp.eq.s32.totalorder %s29, 0
      %p207 = por %p205, %p206
      %p208 = scmp.ne.s32.totalorder %s197, %s200
      %p209 = scmp.eq.s32.totalorder %s34, 3
      %p210 = por %p208, %p209
      %p211 = scmp.ne.s32.totalorder %s200, %s201
      %p212 = scmp.eq.s32.totalorder %s34, 0
      %p213 = por %p211, %p212
      %p214 = scmp.ne.s32.totalorder %s200, %s201
      %p215 = scmp.eq.s32.totalorder %s35, 3
      %p216 = por %p214, %p215
      %p218 = scmp.ne.s32.totalorder %s201, %s217
      %p219 = scmp.eq.s32.totalorder %s35, 0
      %p220 = por %p218, %p219
      %s221 = ssub.s32 %s37, %s44
      %p222 = scmp.eq.s32.totalorder %s221, 0
      %s224 = sadd.s32 %s223, 1
      %s225 = scalar_select %p222, %s223, %s224
      %p228 = pneg %p222
      %p229 = scmp.eq.s32.totalorder %s29, 3
      %p230 = por %p228, %p229
      %p231 = scmp.ne.s32.totalorder %s223, %s226
      %p232 = scmp.eq.s32.totalorder %s29, 0
      %p233 = por %p231, %p232
      %p234 = scmp.ne.s32.totalorder %s223, %s226
      %p235 = scmp.eq.s32.totalorder %s34, 3
      %p236 = por %p234, %p235
      %p237 = scmp.ne.s32.totalorder %s226, %s227
      %p238 = scmp.eq.s32.totalorder %s34, 0
      %p239 = por %p237, %p238
      %p240 = scmp.ne.s32.totalorder %s226, %s227
      %p241 = scmp.eq.s32.totalorder %s35, 3
      %p242 = por %p240, %p241
      %p244 = scmp.ne.s32.totalorder %s227, %s243
      %p245 = scmp.eq.s32.totalorder %s35, 0
      %p246 = por %p244, %p245
      %s247 = ssub.s32 %s37, %s44
      %p248 = scmp.eq.s32.totalorder %s247, 0
      %s250 = sadd.s32 %s249, 1
      %s251 = scalar_select %p248, %s249, %s250
      %p254 = pneg %p248
      %p255 = scmp.eq.s32.totalorder %s29, 3
      %p256 = por %p254, %p255
      %p257 = scmp.ne.s32.totalorder %s249, %s252
      %p258 = scmp.eq.s32.totalorder %s29, 0
      %p259 = por %p257, %p258
      %p260 = scmp.ne.s32.totalorder %s249, %s252
      %p261 = scmp.eq.s32.totalorder %s34, 3
      %p262 = por %p260, %p261
      %p263 = scmp.ne.s32.totalorder %s252, %s253
      %p264 = scmp.eq.s32.totalorder %s34, 0
      %p265 = por %p263, %p264
      %p266 = scmp.ne.s32.totalorder %s252, %s253
      %p267 = scmp.eq.s32.totalorder %s35, 3
      %p268 = por %p266, %p267
      %p270 = scmp.ne.s32.totalorder %s253, %s269
      %p271 = scmp.eq.s32.totalorder %s35, 0
      %p272 = por %p270, %p271
      %s273 = ssub.s32 %s37, %s44
      %p274 = scmp.eq.s32.totalorder %s273, 0
      %s276 = sadd.s32 %s275, 1
      %s277 = scalar_select %p274, %s275, %s276
      %p280 = pneg %p274
      %p281 = scmp.eq.s32.totalorder %s29, 3
      %p282 = por %p280, %p281
      %p283 = scmp.ne.s32.totalorder %s275, %s278
      %p284 = scmp.eq.s32.totalorder %s29, 0
      %p285 = por %p283, %p284
      %p286 = scmp.ne.s32.totalorder %s275, %s278
      %p287 = scmp.eq.s32.totalorder %s34, 3
      %p288 = por %p286, %p287
      %p289 = scmp.ne.s32.totalorder %s278, %s279
      %p290 = scmp.eq.s32.totalorder %s34, 0
      %p291 = por %p289, %p290
      %p292 = scmp.ne.s32.totalorder %s278, %s279
      %p293 = scmp.eq.s32.totalorder %s35, 3
      %p294 = por %p292, %p293
      %p296 = scmp.ne.s32.totalorder %s279, %s295
      %p297 = scmp.eq.s32.totalorder %s35, 0
      %p298 = por %p296, %p297
      %s299 = ssub.s32 %s37, %s44
      %p300 = scmp.eq.s32.totalorder %s299, 0
      %s302 = sadd.s32 %s301, 1
      %s303 = scalar_select %p300, %s301, %s302
      %p306 = pneg %p300
      %p307 = scmp.eq.s32.totalorder %s29, 3
      %p308 = por %p306, %p307
      %p309 = scmp.ne.s32.totalorder %s301, %s304
      %p310 = scmp.eq.s32.totalorder %s29, 0
      %p311 = por %p309, %p310
      %p312 = scmp.ne.s32.totalorder %s301, %s304
      %p313 = scmp.eq.s32.totalorder %s34, 3
      %p314 = por %p312, %p313
      %p315 = scmp.ne.s32.totalorder %s304, %s305
      %p316 = scmp.eq.s32.totalorder %s34, 0
      %p317 = por %p315, %p316
      %p318 = scmp.ne.s32.totalorder %s304, %s305
      %p319 = scmp.eq.s32.totalorder %s35, 3
      %p320 = por %p318, %p319
      %p322 = scmp.ne.s32.totalorder %s305, %s321
      %p323 = scmp.eq.s32.totalorder %s35, 0
      %p324 = por %p322, %p323
      %s325 = ssub.s32 %s37, %s44
      %p326 = scmp.eq.s32.totalorder %s325, 0
      %s328 = sadd.s32 %s327, 1
      %s329 = scalar_select %p326, %s327, %s328
      %p332 = pneg %p326
      %p333 = scmp.eq.s32.totalorder %s29, 3
      %p334 = por %p332, %p333
      %p335 = scmp.ne.s32.totalorder %s327, %s330
      %p336 = scmp.eq.s32.totalorder %s29, 0
      %p337 = por %p335, %p336
      %p338 = scmp.ne.s32.totalorder %s327, %s330
      %p339 = scmp.eq.s32.totalorder %s34, 3
      %p340 = por %p338, %p339
      %p341 = scmp.ne.s32.totalorder %s330, %s331
      %p342 = scmp.eq.s32.totalorder %s34, 0
      %p343 = por %p341, %p342
      %p344 = scmp.ne.s32.totalorder %s330, %s331
      %p345 = scmp.eq.s32.totalorder %s35, 3
      %p346 = por %p344, %p345
      %p348 = scmp.ne.s32.totalorder %s331, %s347
      %p349 = scmp.eq.s32.totalorder %s35, 0
      %p350 = por %p348, %p349
      %s351 = ssub.s32 %s37, %s44
      %p352 = scmp.eq.s32.totalorder %s351, 0
      %s354 = sadd.s32 %s353, 1
      %s355 = scalar_select %p352, %s353, %s354
      %p358 = pneg %p352
      %p359 = scmp.eq.s32.totalorder %s29, 3
      %p360 = por %p358, %p359
      %p361 = scmp.ne.s32.totalorder %s353, %s356
      %p362 = scmp.eq.s32.totalorder %s29, 0
      %p363 = por %p361, %p362
      %p364 = scmp.ne.s32.totalorder %s353, %s356
      %p365 = scmp.eq.s32.totalorder %s34, 3
      %p366 = por %p364, %p365
      %p367 = scmp.ne.s32.totalorder %s356, %s357
      %p368 = scmp.eq.s32.totalorder %s34, 0
      %p369 = por %p367, %p368
      %p370 = scmp.ne.s32.totalorder %s356, %s357
      %p371 = scmp.eq.s32.totalorder %s35, 3
      %p372 = por %p370, %p371
      %p374 = scmp.ne.s32.totalorder %s357, %s373
      %p375 = scmp.eq.s32.totalorder %s35, 0
      %p376 = por %p374, %p375
      %s377 = ssub.s32 %s37, %s44
      %p378 = scmp.eq.s32.totalorder %s377, 0
      %s380 = sadd.s32 %s379, 1
      %s381 = scalar_select %p378, %s379, %s380
      %p384 = pneg %p378
      %p385 = scmp.eq.s32.totalorder %s29, 3
      %p386 = por %p384, %p385
      %p387 = scmp.ne.s32.totalorder %s379, %s382
      %p388 = scmp.eq.s32.totalorder %s29, 0
      %p389 = por %p387, %p388
      %p390 = scmp.ne.s32.totalorder %s379, %s382
      %p391 = scmp.eq.s32.totalorder %s34, 3
      %p392 = por %p390, %p391
      %p393 = scmp.ne.s32.totalorder %s382, %s383
      %p394 = scmp.eq.s32.totalorder %s34, 0
      %p395 = por %p393, %p394
      %p396 = scmp.ne.s32.totalorder %s382, %s383
      %p397 = scmp.eq.s32.totalorder %s35, 3
      %p398 = por %p396, %p397
      %p400 = scmp.ne.s32.totalorder %s383, %s399
      %p401 = scmp.eq.s32.totalorder %s35, 0
      %p402 = por %p400, %p401
      %s403 = ssub.s32 %s37, %s44
      %p404 = scmp.eq.s32.totalorder %s403, 0
      %s406 = sadd.s32 %s405, 1
      %s407 = scalar_select %p404, %s405, %s406
      %p410 = pneg %p404
      %p411 = scmp.eq.s32.totalorder %s29, 3
      %p412 = por %p410, %p411
      %p413 = scmp.ne.s32.totalorder %s405, %s408
      %p414 = scmp.eq.s32.totalorder %s29, 0
      %p415 = por %p413, %p414
      %p416 = scmp.ne.s32.totalorder %s405, %s408
      %p417 = scmp.eq.s32.totalorder %s34, 3
      %p418 = por %p416, %p417
      %p419 = scmp.ne.s32.totalorder %s408, %s409
      %p420 = scmp.eq.s32.totalorder %s34, 0
      %p421 = por %p419, %p420
      %p422 = scmp.ne.s32.totalorder %s408, %s409
      %p423 = scmp.eq.s32.totalorder %s35, 3
      %p424 = por %p422, %p423
      %p426 = scmp.ne.s32.totalorder %s409, %s425
      %p427 = scmp.eq.s32.totalorder %s35, 0
      %p428 = por %p426, %p427
      %s429 = ssub.s32 %s37, %s44
      %p430 = scmp.eq.s32.totalorder %s429, 0
      %s432 = sadd.s32 %s431, 1
      %s433 = scalar_select %p430, %s431, %s432
      %p436 = pneg %p430
      %p437 = scmp.eq.s32.totalorder %s29, 3
      %p438 = por %p436, %p437
      %p439 = scmp.ne.s32.totalorder %s431, %s434
      %p440 = scmp.eq.s32.totalorder %s29, 0
      %p441 = por %p439, %p440
      %p442 = scmp.ne.s32.totalorder %s431, %s434
      %p443 = scmp.eq.s32.totalorder %s34, 3
      %p444 = por %p442, %p443
      %p445 = scmp.ne.s32.totalorder %s434, %s435
      %p446 = scmp.eq.s32.totalorder %s34, 0
      %p447 = por %p445, %p446
      %p448 = scmp.ne.s32.totalorder %s434, %s435
      %p449 = scmp.eq.s32.totalorder %s35, 3
      %p450 = por %p448, %p449
      %p452 = scmp.ne.s32.totalorder %s435, %s451
      %p453 = scmp.eq.s32.totalorder %s35, 0
      %p454 = por %p452, %p453
      %s455 = ssub.s32 %s36, %s48
      %p456 = scmp.eq.s32.totalorder %s455, 0
      %s458 = sadd.s32 %s457, 1
      %s459 = scalar_select %p456, %s457, %s458
      %p462 = pneg %p456
      %p463 = scmp.eq.s32.totalorder %s29, 3
      %p464 = por %p462, %p463
      %p465 = scmp.ne.s32.totalorder %s457, %s460
      %p466 = scmp.eq.s32.totalorder %s29, 0
      %p467 = por %p465, %p466
      %p468 = scmp.ne.s32.totalorder %s457, %s460
      %p469 = scmp.eq.s32.totalorder %s34, 3
      %p470 = por %p468, %p469
      %p471 = scmp.ne.s32.totalorder %s460, %s461
      %p472 = scmp.eq.s32.totalorder %s34, 0
      %p473 = por %p471, %p472
      %p474 = scmp.ne.s32.totalorder %s460, %s461
      %p475 = scmp.eq.s32.totalorder %s35, 3
      %p476 = por %p474, %p475
      %p478 = scmp.ne.s32.totalorder %s461, %s477
      %p479 = scmp.eq.s32.totalorder %s35, 0
      %p480 = por %p478, %p479
      %p481 = scmp.le.s32.totalorder 1, %s29
      %p482 = scmp.lt.s32.totalorder %s29, 5
      %p483 = pnand %p481, %p482
      %p484 = pneg %p483
      // Predicated region
      $region9: #{tpu_custom_call.1} parent=5 // pred_check
        _
      $region10: #{tpu_custom_call.1} parent=5 // pred_check_branch
        %486 = sbr.rel (%p483) target = $region12
      $region11: #{tpu_custom_call.1} parent=5 // pred_region
        %s487 = ssub.s32 %s29, 1
        // Predicated region
        $region13: #{tpu_custom_call.1} parent=11 // pred_check
          %p488 = pneg %p114
        $region14: #{tpu_custom_call.1} parent=11 // pred_check_branch
          %490 = sbr.rel (%p488) target = $region16
        $region15: #{tpu_custom_call.1} parent=11 // pred_region
          _
        $region16: #{tpu_custom_call.1} parent=11 // pred_fallthru
          _
        // Predicated region
        $region17: #{tpu_custom_call.1} parent=11 // pred_check
          %p491 = pneg %p135
        $region18: #{tpu_custom_call.1} parent=11 // pred_check_branch
          %493 = sbr.rel (%p491) target = $region20
        $region19: #{tpu_custom_call.1} parent=11 // pred_region
          %s495 = ssub.s32 16, 16
          %496 = vsyncadd [#allocation7], %s495
          %s498 = sshll.u32 [#allocation6], 4
          %s499 = int_to_ptr.vmem [resolvable:$true] %s498
          %501 = dma.hbm_to_vmem [thread:$0]  %s3, 16, %s499, [#allocation7]
        $region20: #{tpu_custom_call.1} parent=11 // pred_fallthru
          _
      $region12: #{tpu_custom_call.1} parent=5 // pred_fallthru
        _
      %p502 = scmp.lt.s32.totalorder %s29, 4
      // Predicated region
      $region21: #{tpu_custom_call.1} parent=5 // pred_check
        %p503 = pneg %p502
      $region22: #{tpu_custom_call.1} parent=5 // pred_check_branch
        %505 = sbr.rel (%p503) target = $region24
      $region23: #{tpu_custom_call.1} parent=5 // pred_region
        // Predicated region
        $region25: #{tpu_custom_call.1} parent=23 // pred_check
          %p506 = pneg %p61
        $region26: #{tpu_custom_call.1} parent=23 // pred_check_branch
          %508 = sbr.rel (%p506) target = $region28
        $region27: #{tpu_custom_call.1} parent=23 // pred_region
          %s509 = sand.u32 %s51, 1
          %s510 = scalar_lea.sflag [#allocation4], %s509
          %s511 = sand.u32 %s51, 1
          %s512 = smul.addr %s511, 8
          %s513 = scalar_lea.vmem [#allocation3], %s512
          %s515 = ssub.s32 128, 128
          %516 = vsyncadd %s510, %s515
          %s517 = smul.addr %s36, 128
          %s518 = scalar_lea.hbm %s0, %s517
          %s520 = sshll.u32 %s513, 4
          %s521 = int_to_ptr.vmem [resolvable:$true] %s520
          %523 = dma.hbm_to_vmem [thread:$0]  %s518, 128, %s521, %s510
        $region28: #{tpu_custom_call.1} parent=23 // pred_fallthru
          _
        // Predicated region
        $region29: #{tpu_custom_call.1} parent=23 // pred_check
          %p524 = pneg %p87
        $region30: #{tpu_custom_call.1} parent=23 // pred_check_branch
          %526 = sbr.rel (%p524) target = $region32
        $region31: #{tpu_custom_call.1} parent=23 // pred_region
          %p527 = scmp.lt.s32.totalorder %s36, 1
          %s528 = scalar_select %p527, %s36, 1
          %s529 = scalar_lea.vmem %s1, %s528
        $region32: #{tpu_custom_call.1} parent=23 // pred_fallthru
          _
        // Predicated region
        $region33: #{tpu_custom_call.1} parent=23 // pred_check
          %p530 = pneg %p155
        $region34: #{tpu_custom_call.1} parent=23 // pred_check_branch
          %532 = sbr.rel (%p530) target = $region36
        $region35: #{tpu_custom_call.1} parent=23 // pred_region
          %p533 = scmp.lt.s32.totalorder %s37, 1
          %s534 = scalar_select %p533, %s37, 1
          %s535 = smul.addr %s534, 4
          %s536 = smul.addr %s535, 4
          %s537 = scalar_lea.vmem %s4, %s536
        $region36: #{tpu_custom_call.1} parent=23 // pred_fallthru
          _
        // Predicated region
        $region37: #{tpu_custom_call.1} parent=23 // pred_check
          %p538 = pneg %p181
        $region38: #{tpu_custom_call.1} parent=23 // pred_check_branch
          %540 = sbr.rel (%p538) target = $region40
        $region39: #{tpu_custom_call.1} parent=23 // pred_region
          %p541 = scmp.lt.s32.totalorder %s37, 1
          %s542 = scalar_select %p541, %s37, 1
          %s543 = scalar_lea.vmem %s5, %s542
        $region40: #{tpu_custom_call.1} parent=23 // pred_fallthru
          _
        // Predicated region
        $region41: #{tpu_custom_call.1} parent=23 // pred_check
          %p544 = pneg %p207
        $region42: #{tpu_custom_call.1} parent=23 // pred_check_branch
          %546 = sbr.rel (%p544) target = $region44
        $region43: #{tpu_custom_call.1} parent=23 // pred_region
          %p547 = scmp.lt.s32.totalorder %s37, 1
          %s548 = scalar_select %p547, %s37, 1
          %s549 = smul.addr %s548, 4
          %s550 = smul.addr %s549, 4
          %s551 = scalar_lea.vmem %s6, %s550
        $region44: #{tpu_custom_call.1} parent=23 // pred_fallthru
          _
        // Predicated region
        $region45: #{tpu_custom_call.1} parent=23 // pred_check
          %p552 = pneg %p233
        $region46: #{tpu_custom_call.1} parent=23 // pred_check_branch
          %554 = sbr.rel (%p552) target = $region48
        $region47: #{tpu_custom_call.1} parent=23 // pred_region
          %p555 = scmp.lt.s32.totalorder %s37, 1
          %s556 = scalar_select %p555, %s37, 1
          %s557 = scalar_lea.vmem %s7, %s556
        $region48: #{tpu_custom_call.1} parent=23 // pred_fallthru
          _
        // Predicated region
        $region49: #{tpu_custom_call.1} parent=23 // pred_check
          %p558 = pneg %p259
        $region50: #{tpu_custom_call.1} parent=23 // pred_check_branch
          %560 = sbr.rel (%p558) target = $region52
        $region51: #{tpu_custom_call.1} parent=23 // pred_region
          %p561 = scmp.lt.s32.totalorder %s37, 1
          %s562 = scalar_select %p561, %s37, 1
          %s563 = scalar_lea.vmem %s8, %s562
        $region52: #{tpu_custom_call.1} parent=23 // pred_fallthru
          _
        // Predicated region
        $region53: #{tpu_custom_call.1} parent=23 // pred_check
          %p564 = pneg %p285
        $region54: #{tpu_custom_call.1} parent=23 // pred_check_branch
          %566 = sbr.rel (%p564) target = $region56
        $region55: #{tpu_custom_call.1} parent=23 // pred_region
          %p567 = scmp.lt.s32.totalorder %s37, 1
          %s568 = scalar_select %p567, %s37, 1
          %s569 = scalar_lea.vmem %s9, %s568
        $region56: #{tpu_custom_call.1} parent=23 // pred_fallthru
          _
        // Predicated region
        $region57: #{tpu_custom_call.1} parent=23 // pred_check
          %p570 = pneg %p311
        $region58: #{tpu_custom_call.1} parent=23 // pred_check_branch
          %572 = sbr.rel (%p570) target = $region60
        $region59: #{tpu_custom_call.1} parent=23 // pred_region
          %p573 = scmp.lt.s32.totalorder %s37, 1
          %s574 = scalar_select %p573, %s37, 1
          %s575 = smul.addr %s574, 4
          %s576 = smul.addr %s575, 4
          %s577 = scalar_lea.vmem %s10, %s576
        $region60: #{tpu_custom_call.1} parent=23 // pred_fallthru
          _
        // Predicated region
        $region61: #{tpu_custom_call.1} parent=23 // pred_check
          %p578 = pneg %p337
        $region62: #{tpu_custom_call.1} parent=23 // pred_check_branch
          %580 = sbr.rel (%p578) target = $region64
        $region63: #{tpu_custom_call.1} parent=23 // pred_region
          %p581 = scmp.lt.s32.totalorder %s37, 1
          %s582 = scalar_select %p581, %s37, 1
          %s583 = scalar_lea.vmem %s11, %s582
        $region64: #{tpu_custom_call.1} parent=23 // pred_fallthru
          _
        // Predicated region
        $region65: #{tpu_custom_call.1} parent=23 // pred_check
          %p584 = pneg %p363
        $region66: #{tpu_custom_call.1} parent=23 // pred_check_branch
          %586 = sbr.rel (%p584) target = $region68
        $region67: #{tpu_custom_call.1} parent=23 // pred_region
          %p587 = scmp.lt.s32.totalorder %s37, 1
          %s588 = scalar_select %p587, %s37, 1
          %s589 = smul.addr %s588, 8
          %s590 = smul.addr %s589, 4
          %s591 = scalar_lea.vmem %s12, %s590
        $region68: #{tpu_custom_call.1} parent=23 // pred_fallthru
          _
        // Predicated region
        $region69: #{tpu_custom_call.1} parent=23 // pred_check
          %p592 = pneg %p389
        $region70: #{tpu_custom_call.1} parent=23 // pred_check_branch
          %594 = sbr.rel (%p592) target = $region72
        $region71: #{tpu_custom_call.1} parent=23 // pred_region
          %p595 = scmp.lt.s32.totalorder %s37, 1
          %s596 = scalar_select %p595, %s37, 1
          %s597 = scalar_lea.vmem %s13, %s596
        $region72: #{tpu_custom_call.1} parent=23 // pred_fallthru
          _
        // Predicated region
        $region73: #{tpu_custom_call.1} parent=23 // pred_check
          %p598 = pneg %p415
        $region74: #{tpu_custom_call.1} parent=23 // pred_check_branch
          %600 = sbr.rel (%p598) target = $region76
        $region75: #{tpu_custom_call.1} parent=23 // pred_region
          %p601 = scmp.lt.s32.totalorder %s37, 1
          %s602 = scalar_select %p601, %s37, 1
          %s603 = scalar_lea.vmem %s14, %s602
        $region76: #{tpu_custom_call.1} parent=23 // pred_fallthru
          _
        // Predicated region
        $region77: #{tpu_custom_call.1} parent=23 // pred_check
          %p604 = pneg %p441
        $region78: #{tpu_custom_call.1} parent=23 // pred_check_branch
          %606 = sbr.rel (%p604) target = $region80
        $region79: #{tpu_custom_call.1} parent=23 // pred_region
          %p607 = scmp.lt.s32.totalorder %s37, 1
          %s608 = scalar_select %p607, %s37, 1
          %s609 = scalar_lea.vmem %s15, %s608
        $region80: #{tpu_custom_call.1} parent=23 // pred_fallthru
          _
      $region24: #{tpu_custom_call.1} parent=5 // pred_fallthru
        _
      %p610 = scmp.le.s32.totalorder 1, %s29
      %p611 = scmp.lt.s32.totalorder %s29, 5
      %p612 = pnand %p610, %p611
      %p613 = pneg %p612
      // Predicated region
      $region81: #{tpu_custom_call.1} parent=5 // pred_check
        _
      $region82: #{tpu_custom_call.1} parent=5 // pred_check_branch
        %615 = sbr.rel (%p612) target = $region84
      $region83: #{tpu_custom_call.1} parent=5 // pred_region
        %s616 = ssub.s32 %s29, 1
        %s617 = sand.u32 %s54, 1
        %s618 = scalar_lea.sflag [#allocation4], %s617
        %s619 = sand.u32 %s54, 1
        %s620 = smul.addr %s619, 8
        %s621 = scalar_lea.vmem [#allocation3], %s620
        // Predicated region
        $region85: #{tpu_custom_call.1} parent=83 // pred_check
          %p622 = pneg %p67
        $region86: #{tpu_custom_call.1} parent=83 // pred_check_branch
          %624 = sbr.rel (%p622) target = $region88
        $region87: #{tpu_custom_call.1} parent=83 // pred_region
          %625 = dma.done %s618, 128
        $region88: #{tpu_custom_call.1} parent=83 // pred_fallthru
          _
        // Predicated region
        $region89: #{tpu_custom_call.1} parent=83 // pred_check
          %p626 = pneg %p135
        $region90: #{tpu_custom_call.1} parent=83 // pred_check_branch
          %628 = sbr.rel (%p626) target = $region92
        $region91: #{tpu_custom_call.1} parent=83 // pred_region
          %629 = dma.done [#allocation7], 16
        $region92: #{tpu_custom_call.1} parent=83 // pred_fallthru
          _
        %s630 = sand.u32 %s54, 1
        %s631 = scalar_lea.sflag [#allocation4], %s630
        %s632 = sand.u32 %s54, 1
        %s633 = smul.addr %s632, 8
        %s634 = scalar_lea.vmem [#allocation3], %s633
        %p635 = pneg %p67
        %p636 = pneg %p64
        %p637 = scmp.lt.s32.totalorder %s38, 1
        %s638 = scalar_select %p637, %s38, 1
        %s639 = scalar_lea.vmem %s1, %s638
        %p640 = pneg %p93
        %p641 = pneg %p90
        %p642 = pneg %p114
        %p643 = pneg %p111
        %p644 = pneg %p135
        %p645 = pneg %p132
        %p646 = scmp.lt.s32.totalorder %s39, 1
        %s647 = scalar_select %p646, %s39, 1
        %s648 = smul.addr %s647, 4
        %s649 = smul.addr %s648, 4
        %s650 = scalar_lea.vmem %s4, %s649
        %p651 = pneg %p161
        %p652 = pneg %p158
        %p653 = scmp.lt.s32.totalorder %s39, 1
        %s654 = scalar_select %p653, %s39, 1
        %s655 = scalar_lea.vmem %s5, %s654
        %p656 = pneg %p187
        %p657 = pneg %p184
        %p658 = scmp.lt.s32.totalorder %s39, 1
        %s659 = scalar_select %p658, %s39, 1
        %s660 = smul.addr %s659, 4
        %s661 = smul.addr %s660, 4
        %s662 = scalar_lea.vmem %s6, %s661
        %p663 = pneg %p213
        %p664 = pneg %p210
        %p665 = scmp.lt.s32.totalorder %s39, 1
        %s666 = scalar_select %p665, %s39, 1
        %s667 = scalar_lea.vmem %s7, %s666
        %p668 = pneg %p239
        %p669 = pneg %p236
        %p670 = scmp.lt.s32.totalorder %s39, 1
        %s671 = scalar_select %p670, %s39, 1
        %s672 = scalar_lea.vmem %s8, %s671
        %p673 = pneg %p265
        %p674 = pneg %p262
        %p675 = scmp.lt.s32.totalorder %s39, 1
        %s676 = scalar_select %p675, %s39, 1
        %s677 = scalar_lea.vmem %s9, %s676
        %p678 = pneg %p291
        %p679 = pneg %p288
        %p680 = scmp.lt.s32.totalorder %s39, 1
        %s681 = scalar_select %p680, %s39, 1
        %s682 = smul.addr %s681, 4
        %s683 = smul.addr %s682, 4
        %s684 = scalar_lea.vmem %s10, %s683
        %p685 = pneg %p317
        %p686 = pneg %p314
        %p687 = scmp.lt.s32.totalorder %s39, 1
        %s688 = scalar_select %p687, %s39, 1
        %s689 = scalar_lea.vmem %s11, %s688
        %p690 = pneg %p343
        %p691 = pneg %p340
        %p692 = scmp.lt.s32.totalorder %s39, 1
        %s693 = scalar_select %p692, %s39, 1
        %s694 = smul.addr %s693, 8
        %s695 = smul.addr %s694, 4
        %s696 = scalar_lea.vmem %s12, %s695
        %p697 = pneg %p369
        %p698 = pneg %p366
        %p699 = scmp.lt.s32.totalorder %s39, 1
        %s700 = scalar_select %p699, %s39, 1
        %s701 = scalar_lea.vmem %s13, %s700
        %p702 = pneg %p395
        %p703 = pneg %p392
        %p704 = scmp.lt.s32.totalorder %s39, 1
        %s705 = scalar_select %p704, %s39, 1
        %s706 = scalar_lea.vmem %s14, %s705
        %p707 = pneg %p421
        %p708 = pneg %p418
        %p709 = scmp.lt.s32.totalorder %s39, 1
        %s710 = scalar_select %p709, %s39, 1
        %s711 = scalar_lea.vmem %s15, %s710
        %p712 = pneg %p447
        %p713 = pneg %p444
        %p714 = pneg %p473
        %p715 = pneg %p470
        %s716 = sand.u32 %s460, 1
        %s717 = scalar_lea.sflag [#allocation5], %s716
        %s718 = sand.u32 %s460, 1
        %s719 = scalar_lea.vmem [#allocation8], %s718
        %p720 = scmp.lt.s32.totalorder %s38, 1
        %s721 = scalar_select %p720, %s38, 1
        %s722 = scalar_lea.vmem %s1, %s721
        %p723 = scmp.lt.s32.totalorder %s39, 1
        %s724 = scalar_select %p723, %s39, 1
        %s725 = smul.addr %s724, 4
        %s726 = smul.addr %s725, 4
        %s727 = scalar_lea.vmem %s4, %s726
        %p728 = scmp.lt.s32.totalorder %s39, 1
        %s729 = scalar_select %p728, %s39, 1
        %s730 = scalar_lea.vmem %s5, %s729
        %p731 = scmp.lt.s32.totalorder %s39, 1
        %s732 = scalar_select %p731, %s39, 1
        %s733 = smul.addr %s732, 4
        %s734 = smul.addr %s733, 4
        %s735 = scalar_lea.vmem %s6, %s734
        %p736 = scmp.lt.s32.totalorder %s39, 1
        %s737 = scalar_select %p736, %s39, 1
        %s738 = scalar_lea.vmem %s7, %s737
        %p739 = scmp.lt.s32.totalorder %s39, 1
        %s740 = scalar_select %p739, %s39, 1
        %s741 = scalar_lea.vmem %s8, %s740
        %p742 = scmp.lt.s32.totalorder %s39, 1
        %s743 = scalar_select %p742, %s39, 1
        %s744 = scalar_lea.vmem %s9, %s743
        %p745 = scmp.lt.s32.totalorder %s39, 1
        %s746 = scalar_select %p745, %s39, 1
        %s747 = smul.addr %s746, 4
        %s748 = smul.addr %s747, 4
        %s749 = scalar_lea.vmem %s10, %s748
        %p750 = scmp.lt.s32.totalorder %s39, 1
        %s751 = scalar_select %p750, %s39, 1
        %s752 = scalar_lea.vmem %s11, %s751
        %p753 = scmp.lt.s32.totalorder %s39, 1
        %s754 = scalar_select %p753, %s39, 1
        %s755 = smul.addr %s754, 8
        %s756 = smul.addr %s755, 4
        %s757 = scalar_lea.vmem %s12, %s756
        %p758 = scmp.lt.s32.totalorder %s39, 1
        %s759 = scalar_select %p758, %s39, 1
        %s760 = scalar_lea.vmem %s13, %s759
        %p761 = scmp.lt.s32.totalorder %s39, 1
        %s762 = scalar_select %p761, %s39, 1
        %s763 = scalar_lea.vmem %s14, %s762
        %p764 = scmp.lt.s32.totalorder %s39, 1
        %s765 = scalar_select %p764, %s39, 1
        %s766 = scalar_lea.vmem %s15, %s765
        %p768 = scmp.eq.s32.totalorder %s39, 0
        // Predicated region
        $region93: #{tpu_custom_call.1} parent=83 // pred_check
          %p769 = pneg %p768
        $region94: #{tpu_custom_call.1} parent=83 // pred_check_branch
          %771 = sbr.rel (%p769) target = $region96
        $region95: #{tpu_custom_call.1} parent=83 // pred_region
          %v772 = vld [vmem:[%s621] sm:$0xff]
          %v773 = vld [vmem:[%s2] sm:$0x1]
          %v774 = vld [vmem:[#allocation6] sm:$0x1]
          %vm775 = vcmask 261120
          %v776 = vsel %vm775, %v772, 0.0
          %777 = vadd.xlane.f32.xlu0 %v776
          %v778 = vpop.xlane.xlu0 %777
          %v779 = vrcp.pop 32.0
          %v780 = vmul.f32 %v778, %v779
          %v781 = vmul.f32 %v772, %v772
          %v782 = vsel %vm775, %v781, 0.0
          %783 = vadd.xlane.f32.xlu0 %v782
          %v784 = vpop.xlane.xlu0 %783
          %v785 = vmul.f32 %v784, %v779
          %v786 = vmul.f32 %v780, %v780
          %v787 = vsub.f32 %v785, %v786
          %v788 = vmax.f32 %v787, 0.0
          %v789 = vsub.f32 %v772, %v780
          %v790 = vadd.f32 %v788, 1e-12
          %v791 = vrsqrt.pop %v790
          %v792 = vmul.f32 %v789, %v791
          %v794 = vlaneseq
          %v795 = vshrl.u32 %v794, 7
          %v796 = vsub.s32 0, %v795
          %v797 = vrot.slane %v773, %v796
          %v799 = vmul.f32 %v792, %v797
          %v801 = vlaneseq
          %v802 = vshrl.u32 %v801, 7
          %v803 = vsub.s32 0, %v802
          %v804 = vrot.slane %v774, %v803
          %v806 = vadd.f32 %v799, %v804
          %807 = vst.msk [vmem:[#allocation2] sm:$0xff] %vm775, %v806
        $region96: #{tpu_custom_call.1} parent=83 // pred_fallthru
          _
        %v808 = vld [vmem:[#allocation2] sm:$0xff]
        %v809 = vpack.c.bf16 %v808, %v808
        %v810 = vld [vmem:[%s727] sm:$0xf]
        %v811 = vld [vmem:[%s727 + $0x4] sm:$0xf]
        %v812 = vld [vmem:[%s727 + $0x8] sm:$0xf]
        %v813 = vld [vmem:[%s727 + $0xc] sm:$0xf]
        %v814 = vld [vmem:[%s730] sm:$0x1]
        %v816 = vlaneseq
        %v817 = vshrl.u32 %v816, 7
        %v818 = vsub.s32 0, %v817
        %v819 = vrot.slane %v814, %v818
        %v825 = vunpack.c.l.b16 %v810
        %v826 = vunpack.c.l.b16 %v811
        %v827 = vunpack.c.l.b16 %v812
        %v828 = vunpack.c.l.b16 %v813
        %v829 = vpack.c.b16 %v826, %v825
        %v830 = vpack.c.b16 %v828, %v827
        %vm833 = vcmask 261120
        %v835 = vsel %vm833, %v809, 0
        %837 = vmatprep.subr.bf16.mxu0 0
        %838 = vmatpush1.bf16.msra.mxu0 %v829
        %839 = vmatprep.subr.bf16.mxu0 0
        %840 = vmatpush1.bf16.msra.mxu0 %v830
        %841 = vmatprep.subr.bf16.mxu0 0
        %842 = vmatpush1.bf16.msra.mxu0 0
        %843 = vmatprep.subr.bf16.mxu0 0
        %844 = vmatpush1.bf16.msra.mxu0 0
        %845 = vmatprep.subr.bf16.mxu0 0
        %846 = vmatpush1.bf16.msra.mxu0 0
        %847 = vmatprep.subr.bf16.mxu0 0
        %848 = vmatpush1.bf16.msra.mxu0 0
        %849 = vmatprep.subr.bf16.mxu0 0
        %850 = vmatpush1.bf16.msra.mxu0 0
        %851 = vmatprep.subr.bf16.mxu0 0
        %852 = vmatpush1.bf16.msra.mxu0 0
        %853 = vmatprep.subr.bf16.mxu0 0
        %854 = vmatpush1.bf16.msra.mxu0 0
        %855 = vmatprep.subr.bf16.mxu0 0
        %856 = vmatpush1.bf16.msra.mxu0 0
        %857 = vmatprep.subr.bf16.mxu0 0
        %858 = vmatpush1.bf16.msra.mxu0 0
        %859 = vmatprep.subr.bf16.mxu0 0
        %860 = vmatpush1.bf16.msra.mxu0 0
        %861 = vmatprep.subr.bf16.mxu0 0
        %862 = vmatpush1.bf16.msra.mxu0 0
        %863 = vmatprep.subr.bf16.mxu0 0
        %864 = vmatpush1.bf16.msra.mxu0 0
        %865 = vmatprep.subr.bf16.mxu0 0
        %866 = vmatpush1.bf16.msra.mxu0 0
        %867 = vmatprep.subr.bf16.mxu0 0
        %868 = vmatpush1.bf16.msra.mxu0 0
        %869 = vmatprep.mubr.bf16.mxu0 0
        %870 = vmatmul.mubr.bf16.gmra.mrb[0].mxu0 %v835
        %v871 = vpop.f32.mrb[0].mxu0
        %v872 = vadd.f32 %v819, %v871
        %v873 = vpop.f32.mrb[0].mxu0
        %v874 = vpop.f32.mrb[0].mxu0
        %v875 = vpop.f32.mrb[0].mxu0
        %876 = vdwg.mxu0
        %v877 = vmul.f32 %v872, 0.25
        %879 = vrot.lane.b32.xlu0 %v877, 112
        %v880 = vpop.permute.xlu0 %879
        %v882 = vcombine.high %v877, 0.0
        %v884 = vunpack.c.l.s4 1983009808
        %v885 = vunpack.c.0.s8 %v884
        %v886 = vlaneseq
        %v887 = vshrl.u32 %v886, 7
        %v888 = vsub.s32 %v885, %v887
        %v889 = vrot.slane %v877, %v888
        %v891 = vunpack.c.l.s4 1983009808
        %v892 = vunpack.c.0.s8 %v891
        %v893 = vlaneseq
        %v894 = vshrl.u32 %v893, 7
        %v895 = vsub.s32 %v892, %v894
        %v896 = vrot.slane %v882, %v895
        %v897 = vcombine.high %v880, 0.0
        %v899 = vunpack.c.l.s4 1983009808
        %v900 = vunpack.c.0.s8 %v899
        %v901 = vlaneseq
        %v902 = vshrl.u32 %v901, 7
        %v903 = vsub.s32 %v900, %v902
        %v904 = vrot.slane %v880, %v903
        %v906 = vunpack.c.l.s4 1983009808
        %v907 = vunpack.c.0.s8 %v906
        %v908 = vlaneseq
        %v909 = vshrl.u32 %v908, 7
        %v910 = vsub.s32 %v907, %v909
        %v911 = vrot.slane %v897, %v910
        %v912 = vcombine.low %v889, %v904
        %v913 = vcombine.high %v889, %v904
        %v915 = vunpack.c.l.s4 1934713408
        %v916 = vunpack.c.0.s8 %v915
        %v917 = vlaneseq
        %v918 = vshrl.u32 %v917, 7
        %v919 = vsub.s32 %v916, %v918
        %v920 = vrot.slane %v912, %v919
        %v922 = vunpack.c.l.s4 1934713408
        %v923 = vunpack.c.0.s8 %v922
        %v924 = vlaneseq
        %v925 = vshrl.u32 %v924, 7
        %v926 = vsub.s32 %v923, %v925
        %v927 = vrot.slane %v913, %v926
        %v928 = vcombine.low %v896, %v911
        %v929 = vcombine.high %v896, %v911
        %v931 = vunpack.c.l.s4 1934713408
        %v932 = vunpack.c.0.s8 %v931
        %v933 = vlaneseq
        %v934 = vshrl.u32 %v933, 7
        %v935 = vsub.s32 %v932, %v934
        %v936 = vrot.slane %v928, %v935
        %v938 = vunpack.c.l.s4 1934713408
        %v939 = vunpack.c.0.s8 %v938
        %v940 = vlaneseq
        %v941 = vshrl.u32 %v940, 7
        %v942 = vsub.s32 %v939, %v941
        %v943 = vrot.slane %v929, %v942
        %v944 = vcombine.high %v920, 0.0
        %v945 = vcombine.high %v927, 0.0
        %v946 = vcombine.high %v936, 0.0
        %v947 = vcombine.high %v943, 0.0
        %v948 = vcombine.low %v920, %v927
        %v950 = vunpack.c.l.s4 1983009808
        %v951 = vunpack.c.0.s8 %v950
        %v952 = vlaneseq
        %v953 = vshrl.u32 %v952, 7
        %v954 = vsub.s32 %v951, %v953
        %v955 = vrot.slane %v948, %v954
        %v956 = vcombine.low %v944, %v945
        %v958 = vunpack.c.l.s4 1983009808
        %v959 = vunpack.c.0.s8 %v958
        %v960 = vlaneseq
        %v961 = vshrl.u32 %v960, 7
        %v962 = vsub.s32 %v959, %v961
        %v963 = vrot.slane %v956, %v962
        %v964 = vcombine.low %v936, %v943
        %v966 = vunpack.c.l.s4 1983009808
        %v967 = vunpack.c.0.s8 %v966
        %v968 = vlaneseq
        %v969 = vshrl.u32 %v968, 7
        %v970 = vsub.s32 %v967, %v969
        %v971 = vrot.slane %v964, %v970
        %v972 = vcombine.low %v946, %v947
        %v974 = vunpack.c.l.s4 1983009808
        %v975 = vunpack.c.0.s8 %v974
        %v976 = vlaneseq
        %v977 = vshrl.u32 %v976, 7
        %v978 = vsub.s32 %v975, %v977
        %v979 = vrot.slane %v972, %v978
        %v980 = vcombine.low %v955, %v963
        %v982 = vunpack.c.l.s4 1934713408
        %v983 = vunpack.c.0.s8 %v982
        %v984 = vlaneseq
        %v985 = vshrl.u32 %v984, 7
        %v986 = vsub.s32 %v983, %v985
        %v987 = vrot.slane %v980, %v986
        %v988 = vcombine.low %v971, %v979
        %v990 = vunpack.c.l.s4 1934713408
        %v991 = vunpack.c.0.s8 %v990
        %v992 = vlaneseq
        %v993 = vshrl.u32 %v992, 7
        %v994 = vsub.s32 %v991, %v993
        %v995 = vrot.slane %v988, %v994
        %v996 = vcombine.low %v987, %v995
        %v997 = vcombine.high %v987, %v995
        %v998 = vpack.c.bf16 %v996, %v996
        %v999 = vpack.c.bf16 %v997, %v997
        %1001 = vrot.lane.b32.xlu0 %v872, 112
        %v1002 = vpop.permute.xlu0 %1001
        %1003 = vrot.lane.b32.xlu0 %v872, 96
        %v1004 = vpop.permute.xlu0 %1003
        %1005 = vrot.lane.b32.xlu0 %v1002, 96
        %v1006 = vpop.permute.xlu0 %1005
        %v1009 = vcombine.high %v1004, 0.0
        %v1011 = vunpack.c.l.s4 1983009808
        %v1012 = vunpack.c.0.s8 %v1011
        %v1013 = vlaneseq
        %v1014 = vshrl.u32 %v1013, 7
        %v1015 = vsub.s32 %v1012, %v1014
        %v1016 = vrot.slane %v1004, %v1015
        %v1018 = vunpack.c.l.s4 1983009808
        %v1019 = vunpack.c.0.s8 %v1018
        %v1020 = vlaneseq
        %v1021 = vshrl.u32 %v1020, 7
        %v1022 = vsub.s32 %v1019, %v1021
        %v1023 = vrot.slane %v1009, %v1022
        %v1024 = vcombine.high %v1006, 0.0
        %v1026 = vunpack.c.l.s4 1983009808
        %v1027 = vunpack.c.0.s8 %v1026
        %v1028 = vlaneseq
        %v1029 = vshrl.u32 %v1028, 7
        %v1030 = vsub.s32 %v1027, %v1029
        %v1031 = vrot.slane %v1006, %v1030
        %v1033 = vunpack.c.l.s4 1983009808
        %v1034 = vunpack.c.0.s8 %v1033
        %v1035 = vlaneseq
        %v1036 = vshrl.u32 %v1035, 7
        %v1037 = vsub.s32 %v1034, %v1036
        %v1038 = vrot.slane %v1024, %v1037
        %v1039 = vcombine.low %v1016, %v1031
        %v1040 = vcombine.high %v1016, %v1031
        %v1042 = vunpack.c.l.s4 1934713408
        %v1043 = vunpack.c.0.s8 %v1042
        %v1044 = vlaneseq
        %v1045 = vshrl.u32 %v1044, 7
        %v1046 = vsub.s32 %v1043, %v1045
        %v1047 = vrot.slane %v1039, %v1046
        %v1049 = vunpack.c.l.s4 1934713408
        %v1050 = vunpack.c.0.s8 %v1049
        %v1051 = vlaneseq
        %v1052 = vshrl.u32 %v1051, 7
        %v1053 = vsub.s32 %v1050, %v1052
        %v1054 = vrot.slane %v1040, %v1053
        %v1055 = vcombine.low %v1023, %v1038
        %v1056 = vcombine.high %v1023, %v1038
        %v1058 = vunpack.c.l.s4 1934713408
        %v1059 = vunpack.c.0.s8 %v1058
        %v1060 = vlaneseq
        %v1061 = vshrl.u32 %v1060, 7
        %v1062 = vsub.s32 %v1059, %v1061
        %v1063 = vrot.slane %v1055, %v1062
        %v1065 = vunpack.c.l.s4 1934713408
        %v1066 = vunpack.c.0.s8 %v1065
        %v1067 = vlaneseq
        %v1068 = vshrl.u32 %v1067, 7
        %v1069 = vsub.s32 %v1066, %v1068
        %v1070 = vrot.slane %v1056, %v1069
        %v1071 = vcombine.high %v1047, 0.0
        %v1072 = vcombine.high %v1054, 0.0
        %v1073 = vcombine.high %v1063, 0.0
        %v1074 = vcombine.high %v1070, 0.0
        %v1075 = vcombine.low %v1047, %v1054
        %v1077 = vunpack.c.l.s4 1983009808
        %v1078 = vunpack.c.0.s8 %v1077
        %v1079 = vlaneseq
        %v1080 = vshrl.u32 %v1079, 7
        %v1081 = vsub.s32 %v1078, %v1080
        %v1082 = vrot.slane %v1075, %v1081
        %v1083 = vcombine.low %v1071, %v1072
        %v1085 = vunpack.c.l.s4 1983009808
        %v1086 = vunpack.c.0.s8 %v1085
        %v1087 = vlaneseq
        %v1088 = vshrl.u32 %v1087, 7
        %v1089 = vsub.s32 %v1086, %v1088
        %v1090 = vrot.slane %v1083, %v1089
        %v1091 = vcombine.low %v1063, %v1070
        %v1093 = vunpack.c.l.s4 1983009808
        %v1094 = vunpack.c.0.s8 %v1093
        %v1095 = vlaneseq
        %v1096 = vshrl.u32 %v1095, 7
        %v1097 = vsub.s32 %v1094, %v1096
        %v1098 = vrot.slane %v1091, %v1097
        %v1099 = vcombine.low %v1073, %v1074
        %v1101 = vunpack.c.l.s4 1983009808
        %v1102 = vunpack.c.0.s8 %v1101
        %v1103 = vlaneseq
        %v1104 = vshrl.u32 %v1103, 7
        %v1105 = vsub.s32 %v1102, %v1104
        %v1106 = vrot.slane %v1099, %v1105
        %v1107 = vcombine.low %v1082, %v1090
        %v1109 = vunpack.c.l.s4 1934713408
        %v1110 = vunpack.c.0.s8 %v1109
        %v1111 = vlaneseq
        %v1112 = vshrl.u32 %v1111, 7
        %v1113 = vsub.s32 %v1110, %v1112
        %v1114 = vrot.slane %v1107, %v1113
        %v1115 = vcombine.low %v1098, %v1106
        %v1117 = vunpack.c.l.s4 1934713408
        %v1118 = vunpack.c.0.s8 %v1117
        %v1119 = vlaneseq
        %v1120 = vshrl.u32 %v1119, 7
        %v1121 = vsub.s32 %v1118, %v1120
        %v1122 = vrot.slane %v1115, %v1121
        %v1123 = vcombine.low %v1114, %v1122
        %v1124 = vcombine.high %v1114, %v1122
        %v1125 = vpack.c.bf16 %v1123, %v1123
        %v1126 = vpack.c.bf16 %v1124, %v1124
        %1127 = vrot.lane.b32.xlu0 %v872, 64
        %v1128 = vpop.permute.xlu0 %1127
        %1129 = vrot.lane.b32.xlu0 %v1002, 64
        %v1130 = vpop.permute.xlu0 %1129
        %v1133 = vcombine.high %v1128, 0.0
        %v1135 = vunpack.c.l.s4 1983009808
        %v1136 = vunpack.c.0.s8 %v1135
        %v1137 = vlaneseq
        %v1138 = vshrl.u32 %v1137, 7
        %v1139 = vsub.s32 %v1136, %v1138
        %v1140 = vrot.slane %v1128, %v1139
        %v1142 = vunpack.c.l.s4 1983009808
        %v1143 = vunpack.c.0.s8 %v1142
        %v1144 = vlaneseq
        %v1145 = vshrl.u32 %v1144, 7
        %v1146 = vsub.s32 %v1143, %v1145
        %v1147 = vrot.slane %v1133, %v1146
        %v1148 = vcombine.high %v1130, 0.0
        %v1150 = vunpack.c.l.s4 1983009808
        %v1151 = vunpack.c.0.s8 %v1150
        %v1152 = vlaneseq
        %v1153 = vshrl.u32 %v1152, 7
        %v1154 = vsub.s32 %v1151, %v1153
        %v1155 = vrot.slane %v1130, %v1154
        %v1157 = vunpack.c.l.s4 1983009808
        %v1158 = vunpack.c.0.s8 %v1157
        %v1159 = vlaneseq
        %v1160 = vshrl.u32 %v1159, 7
        %v1161 = vsub.s32 %v1158, %v1160
        %v1162 = vrot.slane %v1148, %v1161
        %v1163 = vcombine.low %v1140, %v1155
        %v1164 = vcombine.high %v1140, %v1155
        %v1166 = vunpack.c.l.s4 1934713408
        %v1167 = vunpack.c.0.s8 %v1166
        %v1168 = vlaneseq
        %v1169 = vshrl.u32 %v1168, 7
        %v1170 = vsub.s32 %v1167, %v1169
        %v1171 = vrot.slane %v1163, %v1170
        %v1173 = vunpack.c.l.s4 1934713408
        %v1174 = vunpack.c.0.s8 %v1173
        %v1175 = vlaneseq
        %v1176 = vshrl.u32 %v1175, 7
        %v1177 = vsub.s32 %v1174, %v1176
        %v1178 = vrot.slane %v1164, %v1177
        %v1179 = vcombine.low %v1147, %v1162
        %v1180 = vcombine.high %v1147, %v1162
        %v1182 = vunpack.c.l.s4 1934713408
        %v1183 = vunpack.c.0.s8 %v1182
        %v1184 = vlaneseq
        %v1185 = vshrl.u32 %v1184, 7
        %v1186 = vsub.s32 %v1183, %v1185
        %v1187 = vrot.slane %v1179, %v1186
        %v1189 = vunpack.c.l.s4 1934713408
        %v1190 = vunpack.c.0.s8 %v1189
        %v1191 = vlaneseq
        %v1192 = vshrl.u32 %v1191, 7
        %v1193 = vsub.s32 %v1190, %v1192
        %v1194 = vrot.slane %v1180, %v1193
        %v1195 = vcombine.high %v1171, 0.0
        %v1196 = vcombine.high %v1178, 0.0
        %v1197 = vcombine.high %v1187, 0.0
        %v1198 = vcombine.high %v1194, 0.0
        %v1199 = vcombine.low %v1171, %v1178
        %v1201 = vunpack.c.l.s4 1983009808
        %v1202 = vunpack.c.0.s8 %v1201
        %v1203 = vlaneseq
        %v1204 = vshrl.u32 %v1203, 7
        %v1205 = vsub.s32 %v1202, %v1204
        %v1206 = vrot.slane %v1199, %v1205
        %v1207 = vcombine.low %v1195, %v1196
        %v1209 = vunpack.c.l.s4 1983009808
        %v1210 = vunpack.c.0.s8 %v1209
        %v1211 = vlaneseq
        %v1212 = vshrl.u32 %v1211, 7
        %v1213 = vsub.s32 %v1210, %v1212
        %v1214 = vrot.slane %v1207, %v1213
        %v1215 = vcombine.low %v1187, %v1194
        %v1217 = vunpack.c.l.s4 1983009808
        %v1218 = vunpack.c.0.s8 %v1217
        %v1219 = vlaneseq
        %v1220 = vshrl.u32 %v1219, 7
        %v1221 = vsub.s32 %v1218, %v1220
        %v1222 = vrot.slane %v1215, %v1221
        %v1223 = vcombine.low %v1197, %v1198
        %v1225 = vunpack.c.l.s4 1983009808
        %v1226 = vunpack.c.0.s8 %v1225
        %v1227 = vlaneseq
        %v1228 = vshrl.u32 %v1227, 7
        %v1229 = vsub.s32 %v1226, %v1228
        %v1230 = vrot.slane %v1223, %v1229
        %v1231 = vcombine.low %v1206, %v1214
        %v1233 = vunpack.c.l.s4 1934713408
        %v1234 = vunpack.c.0.s8 %v1233
        %v1235 = vlaneseq
        %v1236 = vshrl.u32 %v1235, 7
        %v1237 = vsub.s32 %v1234, %v1236
        %v1238 = vrot.slane %v1231, %v1237
        %v1239 = vcombine.low %v1222, %v1230
        %v1241 = vunpack.c.l.s4 1934713408
        %v1242 = vunpack.c.0.s8 %v1241
        %v1243 = vlaneseq
        %v1244 = vshrl.u32 %v1243, 7
        %v1245 = vsub.s32 %v1242, %v1244
        %v1246 = vrot.slane %v1239, %v1245
        %v1247 = vcombine.low %v1238, %v1246
        %v1248 = vcombine.high %v1238, %v1246
        %v1249 = vpack.c.bf16 %v1247, %v1247
        %v1250 = vpack.c.bf16 %v1248, %v1248
        %v1251 = vld [vmem:[%s722] sm:$0x1]
        %vm1252 = vcmp.gt.f32.partialorder %v1251, 0.5
        %v1253 = vsel %vm1252, 0.0, -1e+09
        %v1255 = vlaneseq
        %v1256 = vshrl.u32 %v1255, 7
        %v1257 = vsub.s32 0, %v1256
        %v1258 = vrot.slane %v1253, %v1257
        %vm1260 = vcmask 130048
        %v1262 = vsel %vm1260, %v998, 0
        %v1265 = vsel %vm1260, %v1125, 0
        %1267 = vmatprep.subr.bf16.mxu0 0
        %1268 = vmatpush1.bf16.xpose.msra.mxu0 %v1265
        %1269 = vmatprep.subr.bf16.mxu0 0
        %1270 = vmatpush1.bf16.xpose.msra.mxu0 0
        %1271 = vmatprep.subr.bf16.mxu0 0
        %1272 = vmatpush1.bf16.xpose.msra.mxu0 0
        %1273 = vmatprep.subr.bf16.mxu0 0
        %1274 = vmatpush1.bf16.xpose.msra.mxu0 0
        %1275 = vmatprep.subr.bf16.mxu0 0
        %1276 = vmatpush1.bf16.xpose.msra.mxu0 0
        %1277 = vmatprep.subr.bf16.mxu0 0
        %1278 = vmatpush1.bf16.xpose.msra.mxu0 0
        %1279 = vmatprep.subr.bf16.mxu0 0
        %1280 = vmatpush1.bf16.xpose.msra.mxu0 0
        %1281 = vmatprep.subr.bf16.mxu0 0
        %1282 = vmatpush1.bf16.xpose.msra.mxu0 0
        %1283 = vmatprep.subr.bf16.mxu0 0
        %1284 = vmatpush1.bf16.xpose.msra.mxu0 0
        %1285 = vmatprep.subr.bf16.mxu0 0
        %1286 = vmatpush1.bf16.xpose.msra.mxu0 0
        %1287 = vmatprep.subr.bf16.mxu0 0
        %1288 = vmatpush1.bf16.xpose.msra.mxu0 0
        %1289 = vmatprep.subr.bf16.mxu0 0
        %1290 = vmatpush1.bf16.xpose.msra.mxu0 0
        %1291 = vmatprep.subr.bf16.mxu0 0
        %1292 = vmatpush1.bf16.xpose.msra.mxu0 0
        %1293 = vmatprep.subr.bf16.mxu0 0
        %1294 = vmatpush1.bf16.xpose.msra.mxu0 0
        %1295 = vmatprep.subr.bf16.mxu0 0
        %1296 = vmatpush1.bf16.xpose.msra.mxu0 0
        %1297 = vmatprep.subr.bf16.mxu0 0
        %1298 = vmatpush1.bf16.xpose.msra.mxu0 0
        %1299 = vmatprep.mubr.bf16.mxu0 0
        %1300 = vmatmul.mubr.bf16.gmra.mrb[0].mxu0 %v1262
        %v1301 = vpop.f32.mrb[0].mxu0
        %v1302 = vadd.f32 %v1258, %v1301
        %v1303 = vpop.f32.mrb[0].mxu0
        %v1304 = vpop.f32.mrb[0].mxu0
        %v1305 = vpop.f32.mrb[0].mxu0
        %1306 = vdwg.mxu0
        %v1308 = vsel %vm1260, %v999, 0
        %v1311 = vsel %vm1260, %v1126, 0
        %1313 = vmatprep.subr.bf16.mxu0 0
        %1314 = vmatpush1.bf16.xpose.msra.mxu0 %v1311
        %1315 = vmatprep.subr.bf16.mxu0 0
        %1316 = vmatpush1.bf16.xpose.msra.mxu0 0
        %1317 = vmatprep.subr.bf16.mxu0 0
        %1318 = vmatpush1.bf16.xpose.msra.mxu0 0
        %1319 = vmatprep.subr.bf16.mxu0 0
        %1320 = vmatpush1.bf16.xpose.msra.mxu0 0
        %1321 = vmatprep.subr.bf16.mxu0 0
        %1322 = vmatpush1.bf16.xpose.msra.mxu0 0
        %1323 = vmatprep.subr.bf16.mxu0 0
        %1324 = vmatpush1.bf16.xpose.msra.mxu0 0
        %1325 = vmatprep.subr.bf16.mxu0 0
        %1326 = vmatpush1.bf16.xpose.msra.mxu0 0
        %1327 = vmatprep.subr.bf16.mxu0 0
        %1328 = vmatpush1.bf16.xpose.msra.mxu0 0
        %1329 = vmatprep.subr.bf16.mxu0 0
        %1330 = vmatpush1.bf16.xpose.msra.mxu0 0
        %1331 = vmatprep.subr.bf16.mxu0 0
        %1332 = vmatpush1.bf16.xpose.msra.mxu0 0
        %1333 = vmatprep.subr.bf16.mxu0 0
        %1334 = vmatpush1.bf16.xpose.msra.mxu0 0
        %1335 = vmatprep.subr.bf16.mxu0 0
        %1336 = vmatpush1.bf16.xpose.msra.mxu0 0
        %1337 = vmatprep.subr.bf16.mxu0 0
        %1338 = vmatpush1.bf16.xpose.msra.mxu0 0
        %1339 = vmatprep.subr.bf16.mxu0 0
        %1340 = vmatpush1.bf16.xpose.msra.mxu0 0
        %1341 = vmatprep.subr.bf16.mxu0 0
        %1342 = vmatpush1.bf16.xpose.msra.mxu0 0
        %1343 = vmatprep.subr.bf16.mxu0 0
        %1344 = vmatpush1.bf16.xpose.msra.mxu0 0
        %1345 = vmatprep.mubr.bf16.mxu0 0
        %1346 = vmatmul.mubr.bf16.gmra.mrb[0].mxu0 %v1308
        %v1347 = vpop.f32.mrb[0].mxu0
        %v1348 = vadd.f32 %v1258, %v1347
        %v1349 = vpop.f32.mrb[0].mxu0
        %v1350 = vpop.f32.mrb[0].mxu0
        %v1351 = vpop.f32.mrb[0].mxu0
        %1352 = vdwg.mxu0
        %vm1353 = vcmask 64512
        %v1354 = vsel %vm1353, %v1302, -inf
        %1355 = vmax.xlane.f32.xlu0 %v1354
        %v1356 = vpop.xlane.xlu0 %1355
        %v1357 = vsel %vm1353, %v1348, -inf
        %1358 = vmax.xlane.f32.xlu0 %v1357
        %v1359 = vpop.xlane.xlu0 %1358
        %v1360 = vsub.f32 %v1302, %v1356
        %v1361 = vsub.f32 %v1348, %v1359
        %v1362 = vmul.f32 %v1360, 1.442695
        %v1363 = vpow.pop %v1362
        %v1364 = vmul.f32 %v1361, 1.442695
        %v1365 = vpow.pop %v1364
        %v1366 = vsel %vm1353, %v1363, 0.0
        %1367 = vadd.xlane.f32.xlu0 %v1366
        %v1368 = vpop.xlane.xlu0 %1367
        %v1369 = vsel %vm1353, %v1365, 0.0
        %1370 = vadd.xlane.f32.xlu0 %v1369
        %v1371 = vpop.xlane.xlu0 %1370
        %v1372 = vrcp.pop %v1368
        %v1373 = vrcp.pop %v1371
        %v1374 = vmul.f32 %v1363, %v1372
        %v1375 = vmul.f32 %v1365, %v1373
        %v1376 = vpack.c.bf16 %v1374, %v1374
        %v1377 = vpack.c.bf16 %v1375, %v1375
        %v1379 = vsel %vm1353, %v1376, 0
        %vm1381 = vcmask 1043456
        %v1383 = vsel %vm1381, %v1249, 0
        %1385 = vmatprep.subr.bf16.mxu0 0
        %1386 = vmatpush1.bf16.msra.mxu0 %v1383
        %1387 = vmatprep.subr.bf16.mxu0 0
        %1388 = vmatpush1.bf16.msra.mxu0 0
        %1389 = vmatprep.subr.bf16.mxu0 0
        %1390 = vmatpush1.bf16.msra.mxu0 0
        %1391 = vmatprep.subr.bf16.mxu0 0
        %1392 = vmatpush1.bf16.msra.mxu0 0
        %1393 = vmatprep.subr.bf16.mxu0 0
        %1394 = vmatpush1.bf16.msra.mxu0 0
        %1395 = vmatprep.subr.bf16.mxu0 0
        %1396 = vmatpush1.bf16.msra.mxu0 0
        %1397 = vmatprep.subr.bf16.mxu0 0
        %1398 = vmatpush1.bf16.msra.mxu0 0
        %1399 = vmatprep.subr.bf16.mxu0 0
        %1400 = vmatpush1.bf16.msra.mxu0 0
        %1401 = vmatprep.subr.bf16.mxu0 0
        %1402 = vmatpush1.bf16.msra.mxu0 0
        %1403 = vmatprep.subr.bf16.mxu0 0
        %1404 = vmatpush1.bf16.msra.mxu0 0
        %1405 = vmatprep.subr.bf16.mxu0 0
        %1406 = vmatpush1.bf16.msra.mxu0 0
        %1407 = vmatprep.subr.bf16.mxu0 0
        %1408 = vmatpush1.bf16.msra.mxu0 0
        %1409 = vmatprep.subr.bf16.mxu0 0
        %1410 = vmatpush1.bf16.msra.mxu0 0
        %1411 = vmatprep.subr.bf16.mxu0 0
        %1412 = vmatpush1.bf16.msra.mxu0 0
        %1413 = vmatprep.subr.bf16.mxu0 0
        %1414 = vmatpush1.bf16.msra.mxu0 0
        %1415 = vmatprep.subr.bf16.mxu0 0
        %1416 = vmatpush1.bf16.msra.mxu0 0
        %1417 = vmatprep.mubr.bf16.mxu0 0
        %1418 = vmatmul.mubr.bf16.gmra.mrb[0].mxu0 %v1379
        %v1419 = vpop.f32.mrb[0].mxu0
        %v1420 = vadd.f32 0.0, %v1419
        %v1421 = vpop.f32.mrb[0].mxu0
        %v1422 = vpop.f32.mrb[0].mxu0
        %v1423 = vpop.f32.mrb[0].mxu0
        %1424 = vdwg.mxu0
        %v1426 = vsel %vm1353, %v1377, 0
        %v1429 = vsel %vm1381, %v1250, 0
        %1431 = vmatprep.subr.bf16.mxu0 0
        %1432 = vmatpush1.bf16.msra.mxu0 %v1429
        %1433 = vmatprep.subr.bf16.mxu0 0
        %1434 = vmatpush1.bf16.msra.mxu0 0
        %1435 = vmatprep.subr.bf16.mxu0 0
        %1436 = vmatpush1.bf16.msra.mxu0 0
        %1437 = vmatprep.subr.bf16.mxu0 0
        %1438 = vmatpush1.bf16.msra.mxu0 0
        %1439 = vmatprep.subr.bf16.mxu0 0
        %1440 = vmatpush1.bf16.msra.mxu0 0
        %1441 = vmatprep.subr.bf16.mxu0 0
        %1442 = vmatpush1.bf16.msra.mxu0 0
        %1443 = vmatprep.subr.bf16.mxu0 0
        %1444 = vmatpush1.bf16.msra.mxu0 0
        %1445 = vmatprep.subr.bf16.mxu0 0
        %1446 = vmatpush1.bf16.msra.mxu0 0
        %1447 = vmatprep.subr.bf16.mxu0 0
        %1448 = vmatpush1.bf16.msra.mxu0 0
        %1449 = vmatprep.subr.bf16.mxu0 0
        %1450 = vmatpush1.bf16.msra.mxu0 0
        %1451 = vmatprep.subr.bf16.mxu0 0
        %1452 = vmatpush1.bf16.msra.mxu0 0
        %1453 = vmatprep.subr.bf16.mxu0 0
        %1454 = vmatpush1.bf16.msra.mxu0 0
        %1455 = vmatprep.subr.bf16.mxu0 0
        %1456 = vmatpush1.bf16.msra.mxu0 0
        %1457 = vmatprep.subr.bf16.mxu0 0
        %1458 = vmatpush1.bf16.msra.mxu0 0
        %1459 = vmatprep.subr.bf16.mxu0 0
        %1460 = vmatpush1.bf16.msra.mxu0 0
        %1461 = vmatprep.subr.bf16.mxu0 0
        %1462 = vmatpush1.bf16.msra.mxu0 0
        %1463 = vmatprep.mubr.bf16.mxu0 0
        %1464 = vmatmul.mubr.bf16.gmra.mrb[0].mxu0 %v1426
        %v1465 = vpop.f32.mrb[0].mxu0
        %v1466 = vadd.f32 0.0, %v1465
        %v1467 = vpop.f32.mrb[0].mxu0
        %v1468 = vpop.f32.mrb[0].mxu0
        %v1469 = vpop.f32.mrb[0].mxu0
        %1470 = vdwg.mxu0
        %v1471 = vcombine.high %v1420, 0.0
        %v1473 = vunpack.c.l.s4 1983009808
        %v1474 = vunpack.c.0.s8 %v1473
        %v1475 = vlaneseq
        %v1476 = vshrl.u32 %v1475, 7
        %v1477 = vsub.s32 %v1474, %v1476
        %v1478 = vrot.slane %v1420, %v1477
        %v1480 = vunpack.c.l.s4 1983009808
        %v1481 = vunpack.c.0.s8 %v1480
        %v1482 = vlaneseq
        %v1483 = vshrl.u32 %v1482, 7
        %v1484 = vsub.s32 %v1481, %v1483
        %v1485 = vrot.slane %v1471, %v1484
        %v1486 = vcombine.high %v1466, 0.0
        %v1488 = vunpack.c.l.s4 1983009808
        %v1489 = vunpack.c.0.s8 %v1488
        %v1490 = vlaneseq
        %v1491 = vshrl.u32 %v1490, 7
        %v1492 = vsub.s32 %v1489, %v1491
        %v1493 = vrot.slane %v1466, %v1492
        %v1495 = vunpack.c.l.s4 1983009808
        %v1496 = vunpack.c.0.s8 %v1495
        %v1497 = vlaneseq
        %v1498 = vshrl.u32 %v1497, 7
        %v1499 = vsub.s32 %v1496, %v1498
        %v1500 = vrot.slane %v1486, %v1499
        %v1501 = vcombine.low %v1478, %v1493
        %v1502 = vcombine.high %v1478, %v1493
        %v1504 = vunpack.c.l.s4 1934713408
        %v1505 = vunpack.c.0.s8 %v1504
        %v1506 = vlaneseq
        %v1507 = vshrl.u32 %v1506, 7
        %v1508 = vsub.s32 %v1505, %v1507
        %v1509 = vrot.slane %v1501, %v1508
        %v1511 = vunpack.c.l.s4 1934713408
        %v1512 = vunpack.c.0.s8 %v1511
        %v1513 = vlaneseq
        %v1514 = vshrl.u32 %v1513, 7
        %v1515 = vsub.s32 %v1512, %v1514
        %v1516 = vrot.slane %v1502, %v1515
        %v1517 = vcombine.low %v1485, %v1500
        %v1518 = vcombine.high %v1485, %v1500
        %v1520 = vunpack.c.l.s4 1934713408
        %v1521 = vunpack.c.0.s8 %v1520
        %v1522 = vlaneseq
        %v1523 = vshrl.u32 %v1522, 7
        %v1524 = vsub.s32 %v1521, %v1523
        %v1525 = vrot.slane %v1517, %v1524
        %v1527 = vunpack.c.l.s4 1934713408
        %v1528 = vunpack.c.0.s8 %v1527
        %v1529 = vlaneseq
        %v1530 = vshrl.u32 %v1529, 7
        %v1531 = vsub.s32 %v1528, %v1530
        %v1532 = vrot.slane %v1518, %v1531
        %v1533 = vcombine.high %v1509, 0.0
        %v1534 = vcombine.high %v1516, 0.0
        %v1535 = vcombine.high %v1525, 0.0
        %v1536 = vcombine.high %v1532, 0.0
        %v1537 = vcombine.low %v1509, %v1516
        %v1539 = vunpack.c.l.s4 1983009808
        %v1540 = vunpack.c.0.s8 %v1539
        %v1541 = vlaneseq
        %v1542 = vshrl.u32 %v1541, 7
        %v1543 = vsub.s32 %v1540, %v1542
        %v1544 = vrot.slane %v1537, %v1543
        %v1545 = vcombine.low %v1533, %v1534
        %v1547 = vunpack.c.l.s4 1983009808
        %v1548 = vunpack.c.0.s8 %v1547
        %v1549 = vlaneseq
        %v1550 = vshrl.u32 %v1549, 7
        %v1551 = vsub.s32 %v1548, %v1550
        %v1552 = vrot.slane %v1545, %v1551
        %v1553 = vcombine.low %v1525, %v1532
        %v1555 = vunpack.c.l.s4 1983009808
        %v1556 = vunpack.c.0.s8 %v1555
        %v1557 = vlaneseq
        %v1558 = vshrl.u32 %v1557, 7
        %v1559 = vsub.s32 %v1556, %v1558
        %v1560 = vrot.slane %v1553, %v1559
        %v1561 = vcombine.low %v1535, %v1536
        %v1563 = vunpack.c.l.s4 1983009808
        %v1564 = vunpack.c.0.s8 %v1563
        %v1565 = vlaneseq
        %v1566 = vshrl.u32 %v1565, 7
        %v1567 = vsub.s32 %v1564, %v1566
        %v1568 = vrot.slane %v1561, %v1567
        %v1569 = vcombine.low %v1544, %v1552
        %v1571 = vunpack.c.l.s4 1934713408
        %v1572 = vunpack.c.0.s8 %v1571
        %v1573 = vlaneseq
        %v1574 = vshrl.u32 %v1573, 7
        %v1575 = vsub.s32 %v1572, %v1574
        %v1576 = vrot.slane %v1569, %v1575
        %v1577 = vcombine.low %v1560, %v1568
        %v1579 = vunpack.c.l.s4 1934713408
        %v1580 = vunpack.c.0.s8 %v1579
        %v1581 = vlaneseq
        %v1582 = vshrl.u32 %v1581, 7
        %v1583 = vsub.s32 %v1580, %v1582
        %v1584 = vrot.slane %v1577, %v1583
        %v1585 = vcombine.low %v1576, %v1584
        %v1586 = vcombine.high %v1576, %v1584
        %1588 = vrot.lane.b32.xlu0 %v1586, 16
        %v1589 = vpop.permute.xlu0 %1588
        %v1591 = vsel %vm1260, %v1585, %v1589
        %v1592 = vpack.c.bf16 %v1591, %v1591
        %v1593 = vld [vmem:[%s735] sm:$0xf]
        %v1594 = vld [vmem:[%s735 + $0x4] sm:$0xf]
        %v1595 = vld [vmem:[%s735 + $0x8] sm:$0xf]
        %v1596 = vld [vmem:[%s735 + $0xc] sm:$0xf]
        %v1597 = vld [vmem:[%s738] sm:$0x1]
        %v1599 = vlaneseq
        %v1600 = vshrl.u32 %v1599, 7
        %v1601 = vsub.s32 0, %v1600
        %v1602 = vrot.slane %v1597, %v1601
        %v1608 = vunpack.c.l.b16 %v1593
        %v1609 = vunpack.c.l.b16 %v1594
        %v1610 = vunpack.c.l.b16 %v1595
        %v1611 = vunpack.c.l.b16 %v1596
        %v1612 = vpack.c.b16 %v1609, %v1608
        %v1613 = vpack.c.b16 %v1611, %v1610
        %v1617 = vsel %vm833, %v1592, 0
        %1619 = vmatprep.subr.bf16.mxu0 0
        %1620 = vmatpush1.bf16.msra.mxu0 %v1612
        %1621 = vmatprep.subr.bf16.mxu0 0
        %1622 = vmatpush1.bf16.msra.mxu0 %v1613
        %1623 = vmatprep.subr.bf16.mxu0 0
        %1624 = vmatpush1.bf16.msra.mxu0 0
        %1625 = vmatprep.subr.bf16.mxu0 0
        %1626 = vmatpush1.bf16.msra.mxu0 0
        %1627 = vmatprep.subr.bf16.mxu0 0
        %1628 = vmatpush1.bf16.msra.mxu0 0
        %1629 = vmatprep.subr.bf16.mxu0 0
        %1630 = vmatpush1.bf16.msra.mxu0 0
        %1631 = vmatprep.subr.bf16.mxu0 0
        %1632 = vmatpush1.bf16.msra.mxu0 0
        %1633 = vmatprep.subr.bf16.mxu0 0
        %1634 = vmatpush1.bf16.msra.mxu0 0
        %1635 = vmatprep.subr.bf16.mxu0 0
        %1636 = vmatpush1.bf16.msra.mxu0 0
        %1637 = vmatprep.subr.bf16.mxu0 0
        %1638 = vmatpush1.bf16.msra.mxu0 0
        %1639 = vmatprep.subr.bf16.mxu0 0
        %1640 = vmatpush1.bf16.msra.mxu0 0
        %1641 = vmatprep.subr.bf16.mxu0 0
        %1642 = vmatpush1.bf16.msra.mxu0 0
        %1643 = vmatprep.subr.bf16.mxu0 0
        %1644 = vmatpush1.bf16.msra.mxu0 0
        %1645 = vmatprep.subr.bf16.mxu0 0
        %1646 = vmatpush1.bf16.msra.mxu0 0
        %1647 = vmatprep.subr.bf16.mxu0 0
        %1648 = vmatpush1.bf16.msra.mxu0 0
        %1649 = vmatprep.subr.bf16.mxu0 0
        %1650 = vmatpush1.bf16.msra.mxu0 0
        %1651 = vmatprep.mubr.bf16.mxu0 0
        %1652 = vmatmul.mubr.bf16.gmra.mrb[0].mxu0 %v1617
        %v1653 = vpop.f32.mrb[0].mxu0
        %v1654 = vadd.f32 %v1602, %v1653
        %v1655 = vpop.f32.mrb[0].mxu0
        %v1656 = vpop.f32.mrb[0].mxu0
        %v1657 = vpop.f32.mrb[0].mxu0
        %1658 = vdwg.mxu0
        %v1659 = vadd.f32 %v808, %v1654
        %v1660 = vld [vmem:[%s741] sm:$0x1]
        %v1661 = vld [vmem:[%s744] sm:$0x1]
        %v1662 = vsel %vm833, %v1659, 0.0
        %1663 = vadd.xlane.f32.xlu0 %v1662
        %v1664 = vpop.xlane.xlu0 %1663
        %v1665 = vrcp.pop 32.0
        %v1666 = vmul.f32 %v1664, %v1665
        %v1667 = vmul.f32 %v1659, %v1659
        %v1668 = vsel %vm833, %v1667, 0.0
        %1669 = vadd.xlane.f32.xlu0 %v1668
        %v1670 = vpop.xlane.xlu0 %1669
        %v1671 = vmul.f32 %v1670, %v1665
        %v1672 = vmul.f32 %v1666, %v1666
        %v1673 = vsub.f32 %v1671, %v1672
        %v1674 = vmax.f32 %v1673, 0.0
        %v1675 = vsub.f32 %v1659, %v1666
        %v1676 = vadd.f32 %v1674, 1e-12
        %v1677 = vrsqrt.pop %v1676
        %v1678 = vmul.f32 %v1675, %v1677
        %v1680 = vlaneseq
        %v1681 = vshrl.u32 %v1680, 7
        %v1682 = vsub.s32 0, %v1681
        %v1683 = vrot.slane %v1660, %v1682
        %v1685 = vmul.f32 %v1678, %v1683
        %v1687 = vlaneseq
        %v1688 = vshrl.u32 %v1687, 7
        %v1689 = vsub.s32 0, %v1688
        %v1690 = vrot.slane %v1661, %v1689
        %v1692 = vadd.f32 %v1685, %v1690
        %v1693 = vpack.c.bf16 %v1692, %v1692
        %v1694 = vld [vmem:[%s749] sm:$0xf]
        %v1695 = vld [vmem:[%s749 + $0x4] sm:$0xf]
        %v1696 = vld [vmem:[%s749 + $0x8] sm:$0xf]
        %v1697 = vld [vmem:[%s749 + $0xc] sm:$0xf]
        %v1698 = vld [vmem:[%s752] sm:$0x1]
        %v1700 = vlaneseq
        %v1701 = vshrl.u32 %v1700, 7
        %v1702 = vsub.s32 0, %v1701
        %v1703 = vrot.slane %v1698, %v1702
        %v1709 = vunpack.c.l.b16 %v1694
        %v1710 = vunpack.c.l.b16 %v1695
        %v1711 = vunpack.c.l.b16 %v1696
        %v1712 = vunpack.c.l.b16 %v1697
        %v1713 = vpack.c.b16 %v1710, %v1709
        %v1714 = vpack.c.b16 %v1712, %v1711
        %v1718 = vsel %vm833, %v1693, 0
        %1720 = vmatprep.subr.bf16.mxu0 0
        %1721 = vmatpush1.bf16.msra.mxu0 %v1713
        %1722 = vmatprep.subr.bf16.mxu0 0
        %1723 = vmatpush1.bf16.msra.mxu0 %v1714
        %1724 = vmatprep.subr.bf16.mxu0 0
        %1725 = vmatpush1.bf16.msra.mxu0 0
        %1726 = vmatprep.subr.bf16.mxu0 0
        %1727 = vmatpush1.bf16.msra.mxu0 0
        %1728 = vmatprep.subr.bf16.mxu0 0
        %1729 = vmatpush1.bf16.msra.mxu0 0
        %1730 = vmatprep.subr.bf16.mxu0 0
        %1731 = vmatpush1.bf16.msra.mxu0 0
        %1732 = vmatprep.subr.bf16.mxu0 0
        %1733 = vmatpush1.bf16.msra.mxu0 0
        %1734 = vmatprep.subr.bf16.mxu0 0
        %1735 = vmatpush1.bf16.msra.mxu0 0
        %1736 = vmatprep.subr.bf16.mxu0 0
        %1737 = vmatpush1.bf16.msra.mxu0 0
        %1738 = vmatprep.subr.bf16.mxu0 0
        %1739 = vmatpush1.bf16.msra.mxu0 0
        %1740 = vmatprep.subr.bf16.mxu0 0
        %1741 = vmatpush1.bf16.msra.mxu0 0
        %1742 = vmatprep.subr.bf16.mxu0 0
        %1743 = vmatpush1.bf16.msra.mxu0 0
        %1744 = vmatprep.subr.bf16.mxu0 0
        %1745 = vmatpush1.bf16.msra.mxu0 0
        %1746 = vmatprep.subr.bf16.mxu0 0
        %1747 = vmatpush1.bf16.msra.mxu0 0
        %1748 = vmatprep.subr.bf16.mxu0 0
        %1749 = vmatpush1.bf16.msra.mxu0 0
        %1750 = vmatprep.subr.bf16.mxu0 0
        %1751 = vmatpush1.bf16.msra.mxu0 0
        %1752 = vmatprep.mubr.bf16.mxu0 0
        %1753 = vmatmul.mubr.bf16.gmra.mrb[0].mxu0 %v1718
        %v1754 = vpop.f32.mrb[0].mxu0
        %v1755 = vadd.f32 %v1703, %v1754
        %v1756 = vpop.f32.mrb[0].mxu0
        %v1757 = vpop.f32.mrb[0].mxu0
        %v1758 = vpop.f32.mrb[0].mxu0
        %1759 = vdwg.mxu0
        %v1760 = vmul.f32 %v1755, %v1755
        %v1761 = vmul.f32 %v1755, %v1760
        %v1762 = vmul.f32 %v1761, 0.044715
        %v1763 = vadd.f32 %v1755, %v1762
        %v1764 = vmul.f32 %v1763, 0.7978846
        %v1765 = vtanh.pop %v1764
        %v1766 = vadd.f32 %v1765, 1.0
        %v1767 = vmul.f32 %v1766, 0.5
        %v1768 = vmul.f32 %v1755, %v1767
        %v1769 = vpack.c.bf16 %v1768, %v1768
        %v1770 = vld [vmem:[%s757] sm:$0xf]
        %v1771 = vld [vmem:[%s757 + $0x4] sm:$0xf]
        %v1772 = vld [vmem:[%s757 + $0x8] sm:$0xf]
        %v1773 = vld [vmem:[%s757 + $0xc] sm:$0xf]
        %v1774 = vld [vmem:[%s757 + $0x10] sm:$0xf]
        %v1775 = vld [vmem:[%s757 + $0x14] sm:$0xf]
        %v1776 = vld [vmem:[%s757 + $0x18] sm:$0xf]
        %v1777 = vld [vmem:[%s757 + $0x1c] sm:$0xf]
        %v1778 = vld [vmem:[%s760] sm:$0x1]
        %v1780 = vlaneseq
        %v1781 = vshrl.u32 %v1780, 7
        %v1782 = vsub.s32 0, %v1781
        %v1783 = vrot.slane %v1778, %v1782
        %v1793 = vunpack.c.l.b16 %v1770
        %v1794 = vunpack.c.l.b16 %v1771
        %v1795 = vunpack.c.l.b16 %v1772
        %v1796 = vunpack.c.l.b16 %v1773
        %v1797 = vunpack.c.l.b16 %v1774
        %v1798 = vunpack.c.l.b16 %v1775
        %v1799 = vunpack.c.l.b16 %v1776
        %v1800 = vunpack.c.l.b16 %v1777
        %v1801 = vpack.c.b16 %v1794, %v1793
        %v1802 = vpack.c.b16 %v1796, %v1795
        %v1803 = vpack.c.b16 %v1798, %v1797
        %v1804 = vpack.c.b16 %v1800, %v1799
        %vm1809 = vcmask 523264
        %v1811 = vsel %vm1809, %v1769, 0
        %1813 = vmatprep.subr.bf16.mxu0 0
        %1814 = vmatpush1.bf16.msra.mxu0 %v1801
        %1815 = vmatprep.subr.bf16.mxu0 0
        %1816 = vmatpush1.bf16.msra.mxu0 %v1802
        %1817 = vmatprep.subr.bf16.mxu0 0
        %1818 = vmatpush1.bf16.msra.mxu0 %v1803
        %1819 = vmatprep.subr.bf16.mxu0 0
        %1820 = vmatpush1.bf16.msra.mxu0 %v1804
        %1821 = vmatprep.subr.bf16.mxu0 0
        %1822 = vmatpush1.bf16.msra.mxu0 0
        %1823 = vmatprep.subr.bf16.mxu0 0
        %1824 = vmatpush1.bf16.msra.mxu0 0
        %1825 = vmatprep.subr.bf16.mxu0 0
        %1826 = vmatpush1.bf16.msra.mxu0 0
        %1827 = vmatprep.subr.bf16.mxu0 0
        %1828 = vmatpush1.bf16.msra.mxu0 0
        %1829 = vmatprep.subr.bf16.mxu0 0
        %1830 = vmatpush1.bf16.msra.mxu0 0
        %1831 = vmatprep.subr.bf16.mxu0 0
        %1832 = vmatpush1.bf16.msra.mxu0 0
        %1833 = vmatprep.subr.bf16.mxu0 0
        %1834 = vmatpush1.bf16.msra.mxu0 0
        %1835 = vmatprep.subr.bf16.mxu0 0
        %1836 = vmatpush1.bf16.msra.mxu0 0
        %1837 = vmatprep.subr.bf16.mxu0 0
        %1838 = vmatpush1.bf16.msra.mxu0 0
        %1839 = vmatprep.subr.bf16.mxu0 0
        %1840 = vmatpush1.bf16.msra.mxu0 0
        %1841 = vmatprep.subr.bf16.mxu0 0
        %1842 = vmatpush1.bf16.msra.mxu0 0
        %1843 = vmatprep.subr.bf16.mxu0 0
        %1844 = vmatpush1.bf16.msra.mxu0 0
        %1845 = vmatprep.mubr.bf16.mxu0 0
        %1846 = vmatmul.mubr.bf16.gmra.mrb[0].mxu0 %v1811
        %v1847 = vpop.f32.mrb[0].mxu0
        %v1848 = vadd.f32 %v1783, %v1847
        %v1849 = vpop.f32.mrb[0].mxu0
        %v1850 = vpop.f32.mrb[0].mxu0
        %v1851 = vpop.f32.mrb[0].mxu0
        %1852 = vdwg.mxu0
        %v1853 = vadd.f32 %v1692, %v1848
        %v1854 = vld [vmem:[%s763] sm:$0x1]
        %v1855 = vld [vmem:[%s766] sm:$0x1]
        %v1856 = vsel %vm833, %v1853, 0.0
        %1857 = vadd.xlane.f32.xlu0 %v1856
        %v1858 = vpop.xlane.xlu0 %1857
        %v1859 = vmul.f32 %v1858, %v1665
        %v1860 = vmul.f32 %v1853, %v1853
        %v1861 = vsel %vm833, %v1860, 0.0
        %1862 = vadd.xlane.f32.xlu0 %v1861
        %v1863 = vpop.xlane.xlu0 %1862
        %v1864 = vmul.f32 %v1863, %v1665
        %v1865 = vmul.f32 %v1859, %v1859
        %v1866 = vsub.f32 %v1864, %v1865
        %v1867 = vmax.f32 %v1866, 0.0
        %v1868 = vsub.f32 %v1853, %v1859
        %v1869 = vadd.f32 %v1867, 1e-12
        %v1870 = vrsqrt.pop %v1869
        %v1871 = vmul.f32 %v1868, %v1870
        %v1873 = vlaneseq
        %v1874 = vshrl.u32 %v1873, 7
        %v1875 = vsub.s32 0, %v1874
        %v1876 = vrot.slane %v1854, %v1875
        %v1878 = vmul.f32 %v1871, %v1876
        %v1880 = vlaneseq
        %v1881 = vshrl.u32 %v1880, 7
        %v1882 = vsub.s32 0, %v1881
        %v1883 = vrot.slane %v1855, %v1882
        %v1885 = vadd.f32 %v1878, %v1883
        %1886 = vst.msk [vmem:[#allocation2] sm:$0xff] %vm833, %v1885
        %p1887 = scmp.eq.s32.totalorder %s39, 1
        // Predicated region
        $region97: #{tpu_custom_call.1} parent=83 // pred_check
          %p1888 = pneg %p1887
        $region98: #{tpu_custom_call.1} parent=83 // pred_check_branch
          %1890 = sbr.rel (%p1888) target = $region100
        $region99: #{tpu_custom_call.1} parent=83 // pred_region
          %v1891 = vld [vmem:[#allocation2] ss:$8 sm:$0x1]
          %vm1892 = vcmask 253952
          %1893 = vst.msk [vmem:[%s719] sm:$0x1] %vm1892, %v1891
        $region100: #{tpu_custom_call.1} parent=83 // pred_fallthru
          _
        %s1894 = sand.u32 %s460, 1
        %s1895 = scalar_lea.sflag [#allocation5], %s1894
        %s1896 = sand.u32 %s460, 1
        %s1897 = scalar_lea.vmem [#allocation8], %s1896
        // Predicated region
        $region101: #{tpu_custom_call.1} parent=83 // pred_check
          %p1898 = pneg %p470
        $region102: #{tpu_custom_call.1} parent=83 // pred_check_branch
          %1900 = sbr.rel (%p1898) target = $region104
        $region103: #{tpu_custom_call.1} parent=83 // pred_region
          %s1902 = ssub.s32 16, 16
          %1903 = vsyncadd %s1895, %s1902
          %s1904 = smul.addr %s38, 16
          %s1905 = scalar_lea.hbm %s16, %s1904
          %s1907 = sshll.u32 %s1897, 4
          %s1908 = int_to_ptr.vmem [resolvable:$true] %s1907
          %1910 = dma.vmem_to_hbm [thread:$0]  %s1908, 16, %s1905, %s1895
        $region104: #{tpu_custom_call.1} parent=83 // pred_fallthru
          _
      $region84: #{tpu_custom_call.1} parent=5 // pred_fallthru
        _
      %p1911 = scmp.le.s32.totalorder 2, %s29
      // Predicated region
      $region105: #{tpu_custom_call.1} parent=5 // pred_check
        %p1912 = pneg %p1911
      $region106: #{tpu_custom_call.1} parent=5 // pred_check_branch
        %1914 = sbr.rel (%p1912) target = $region108
      $region107: #{tpu_custom_call.1} parent=5 // pred_region
        %s1915 = ssub.s32 %s29, 2
        // Predicated region
        $region109: #{tpu_custom_call.1} parent=107 // pred_check
          %p1916 = pneg %p476
        $region110: #{tpu_custom_call.1} parent=107 // pred_check_branch
          %1918 = sbr.rel (%p1916) target = $region112
        $region111: #{tpu_custom_call.1} parent=107 // pred_region
          %s1919 = sand.u32 %s461, 1
          %s1920 = scalar_lea.sflag [#allocation5], %s1919
          %s1921 = sand.u32 %s461, 1
          %s1922 = scalar_lea.vmem [#allocation8], %s1921
          %1923 = dma.done %s1920, 16
        $region112: #{tpu_custom_call.1} parent=107 // pred_fallthru
          _
      $region108: #{tpu_custom_call.1} parent=5 // pred_fallthru
        _
    $region6: #{tpu_custom_call.1} parent=1 // loop_footer
      %s33 = sadd.s32 1, %s29
    $region7: #{tpu_custom_call.1} parent=1 // loop_footer_branch
      %28 = sbr.rel target = $region3
    $region8: #{tpu_custom_call.1} parent=1 // loop_exit
      _
    %1924 = vsyncpa [#allocation4], 1
    %s1925 = scalar_lea.sflag [#allocation4], 1
    %1926 = vsyncpa %s1925, 1
    %1927 = vsyncpa [#allocation7], 1
    %1928 = vsyncpa [#allocation5], 1
    %s1929 = scalar_lea.sflag [#allocation5], 1
    %1930 = vsyncpa %s1929, 1

</llo_original>
